<compile_context>
chip_gen: v5e
topology: v5e:2x2
jax: 0.10.0
libtpu: 0.0.40
codegen_flags: <defaults>
</compile_context>

<pallas_src>
import functools

import jax
import jax.numpy as jnp
from jax.experimental import pallas as pl
from jax.experimental.pallas import tpu as pltpu

FEATURE_DIM = 29
LSTM_H_DIM = 128
ATTN_W_DIM = 64


def _sigmoid(x):
    # sigmoid(x) == 0.5 * tanh(0.5 * x) + 0.5 : one EUP push (tanh) instead of
    # exp + reciprocal; the extra mul/add land in VALU slots that have slack.
    half = jnp.asarray(0.5, x.dtype)
    return half * jnp.tanh(x * half) + half


def lstmha_kernel(x_ref, wih_ref, whh_ref, b_ref, out_ref, gx_ref, *, gate_dtype):
    """Fused single-layer LSTM + (elided) StdAttn over one TB-row tile.

    x_ref  : (K, TB, F)      time-major row block (leading-dim slabs per step)
    wih_ref: (F, 4H)         MXU operand (bf16 or f32)
    whh_ref: (H, 4H)         MXU operand (bf16 or f32)
    b_ref  : (1, 4H)         f32, b_ih + b_hh
    out_ref: (TB, H)         sum_t h_t  (StdAttn softmax over a size-1 axis == 1)
    gx_ref : ((K-1)*TB, 4H)  staged input projection for steps 1..K-1
    """
    K, TB, F = x_ref.shape
    H = whh_ref.shape[0]
    cdt = wih_ref.dtype                         # MXU compute dtype

    wih = wih_ref[...]                          # (F, 4H)
    whh = whh_ref[...]                          # (H, 4H)
    b = b_ref[...]                              # (1, 4H)  f32

    # t = 0 projection: small matmul whose dependent gate math (EUP-bound) is
    # independent of the big fused projection below, so the scheduler can
    # overlap the two (same unrolled region, no control flow in between).
    gates0 = jnp.dot(x_ref[0].astype(cdt), wih,
                     preferred_element_type=jnp.float32) + b

    # ONE fused projection matmul for steps 1..K-1 — leading-dim slab, no
    # middle-dim sublane slicing — staged in VMEM.  The recurrence then carries
    # only h @ W_hh on its sequential chain.
    x_rest = x_ref[pl.ds(1, K - 1), :, :].reshape((K - 1) * TB, F).astype(cdt)
    gx_ref[...] = (jnp.dot(x_rest, wih, preferred_element_type=jnp.float32)
                   + b).astype(gx_ref.dtype)

    def gate_math(gates_f32, c_prev):
        g = gates_f32.astype(gate_dtype)        # bf16 on v6e/v7x (bf16 EUP/VPU)
        i_g = _sigmoid(g[:, 0 * H:1 * H])
        g_g = jnp.tanh(g[:, 2 * H:3 * H])
        o_g = _sigmoid(g[:, 3 * H:4 * H])
        if c_prev is None:                      # c0 == 0 -> skip the f*c term
            c = (i_g * g_g).astype(jnp.float32)
        else:
            f_g = _sigmoid(g[:, 1 * H:2 * H])
            c = f_g * c_prev + i_g * g_g        # promotes to f32 (c stays f32)
        h = o_g * jnp.tanh(c.astype(gate_dtype))
        return h, c

    # Recurrence, unrolled over the static window K (K is small here).
    # TODO(synk): for K >> 16 switch to lax.fori_loop(..., unroll=2..4) with
    # h/c/acc held in small VMEM scratch to bound live ranges.
    h, c = gate_math(gates0, None)              # h0 == 0 -> no h @ W_hh at t=0
    acc = h.astype(jnp.float32)
    for t in range(1, K):
        gates = jnp.dot(h.astype(cdt), whh,
                        preferred_element_type=jnp.float32) \
            + gx_ref[pl.ds((t - 1) * TB, TB), :]
        h, c = gate_math(gates, c)
        acc = acc + h

    out_ref[...] = acc.astype(out_ref.dtype)


def _auto_gate_dtype(mxu_dtype):
    """bf16 gate activations only where the VPU/EUP are bf16-capable."""
    if mxu_dtype == jnp.float32:
        return jnp.float32
    try:
        kind = jax.devices()[0].device_kind.lower()
    except Exception:
        return jnp.float32
    if any(v in kind for v in ("v2", "v3", "v4", "v5")):
        return jnp.float32
    return jnp.bfloat16


def init_params(key, f=FEATURE_DIM, h=LSTM_H_DIM, a=ATTN_W_DIM):
    ks = jax.random.split(key, 10)
    u = lambda k, shape, s: jax.random.uniform(k, shape, jnp.float32, -s, s)
    s_lstm = 1.0 / float(jnp.sqrt(h))
    w_ih = u(ks[0], (4 * h, f), s_lstm)
    w_hh = u(ks[1], (4 * h, h), s_lstm)
    b_ih = u(ks[2], (4 * h,), s_lstm)
    b_hh = u(ks[3], (4 * h,), s_lstm)
    s_lin = 1.0 / float(jnp.sqrt(h))
    wq = u(ks[4], (a, h), s_lin); bq = u(ks[5], (a,), s_lin)
    wk = u(ks[6], (a, h), s_lin); bk = u(ks[7], (a,), s_lin)
    s_s = 1.0 / float(jnp.sqrt(a))
    ws = u(ks[8], (1, a), s_s); bs = u(ks[9], (1,), s_s)
    return dict(
        wih_t=w_ih.T, whh_t=w_hh.T, b=(b_ih + b_hh).reshape(1, 4 * h),
        # Attention params are kept (the module owns them) but are dead code in
        # the forward pass; they are exercised only by the pure-JAX reference.
        wq_t=wq.T, bq=bq.reshape(1, a),
        wk_t=wk.T, bk=bk.reshape(1, a),
        ws=ws, bs=bs.reshape(1, 1),
    )


def lstmha_forward(x, params, *, tb=256, mxu_dtype=jnp.bfloat16,
                   gate_dtype=None, gx_dtype=jnp.float32):
    """tb: row tile (sweepable; 256-512 recommended on real workloads — keep the
    grid >= 4 on v7x so the parallel axis feeds both TensorCores and still
    pipelines).  gx_dtype=jnp.bfloat16 halves the staging scratch (useful under
    v7x's 64 MiB VMEM)."""
    B, N, K, F = x.shape
    assert K >= 2, "window size K must be >= 2"
    BN = B * N
    H = params["whh_t"].shape[0]
    if gate_dtype is None:
        gate_dtype = _auto_gate_dtype(mxu_dtype)

    # Row tile must be a multiple of 8 sublanes and no larger than the padded
    # problem (keeps BN_pad close to BN so padded rows do little wasted work).
    tb = max(8, (min(tb, BN + 7) // 8) * 8)
    BN_pad = pl.cdiv(BN, tb) * tb

    # Time-major (K, BN, F): per-step reads in the kernel are leading-dim slabs.
    x2 = jnp.swapaxes(x.reshape(BN, K, F), 0, 1).astype(jnp.float32)
    if BN_pad != BN:
        x2 = jnp.pad(x2, ((0, 0), (0, BN_pad - BN), (0, 0)))

    wih = params["wih_t"].astype(mxu_dtype)       # (F, 4H)
    whh = params["whh_t"].astype(mxu_dtype)       # (H, 4H)
    b = params["b"].astype(jnp.float32)           # (1, 4H)

    def full_spec(arr):
        n = arr.ndim
        return pl.BlockSpec(arr.shape, lambda i, _n=n: (0,) * _n)

    kernel = functools.partial(lstmha_kernel, gate_dtype=gate_dtype)

    out = pl.pallas_call(
        kernel,
        out_shape=jax.ShapeDtypeStruct((BN_pad, H), jnp.float32),
        grid_spec=pltpu.PrefetchScalarGridSpec(
            num_scalar_prefetch=0,
            grid=(BN_pad // tb,),
            in_specs=[
                pl.BlockSpec((K, tb, F), lambda i: (0, i, 0)),
                full_spec(wih),
                full_spec(whh),
                full_spec(b),
            ],
            out_specs=pl.BlockSpec((tb, H), lambda i: (i, 0)),
            # Staged input projection for steps 1..K-1 (flat leading dim so each
            # per-step read is a sublane-aligned static slice).
            scratch_shapes=[pltpu.VMEM(((K - 1) * tb, 4 * H), gx_dtype)],
        ),
        compiler_params=pltpu.CompilerParams(
            dimension_semantics=("parallel",),
            vmem_limit_bytes=32 * 1024 * 1024,
        ),
    )(x2, wih, whh, b)
    return out[:BN].reshape(B, N, H)


def reference_forward(x, params):
    """Pure-JAX reference mirroring the PyTorch forward (eval mode), including
    the full StdAttn path (whose softmax over a size-1 dim is identically 1)."""
    B, N, K, F = x.shape
    BN = B * N
    x2 = x.reshape(BN, K, F).astype(jnp.float32)
    H = params["whh_t"].shape[0]

    def step(carry, x_t):
        h, c = carry
        gates = x_t @ params["wih_t"] + h @ params["whh_t"] + params["b"][0]
        i_g = jax.nn.sigmoid(gates[:, :H])
        f_g = jax.nn.sigmoid(gates[:, H:2 * H])
        g_g = jnp.tanh(gates[:, 2 * H:3 * H])
        o_g = jax.nn.sigmoid(gates[:, 3 * H:])
        c = f_g * c + i_g * g_g
        h = o_g * jnp.tanh(c)
        return (h, c), h

    h0 = jnp.zeros((BN, H), jnp.float32)
    c0 = jnp.zeros((BN, H), jnp.float32)
    _, outs_t = jax.lax.scan(step, (h0, c0), jnp.swapaxes(x2, 0, 1))
    outs = jnp.swapaxes(outs_t, 0, 1)                                    # (BN, K, H)

    k_last = outs[:, -1, :]
    q3 = outs.reshape(K, BN, H)                                          # torch reshape
    tq = q3 @ params["wq_t"] + params["bq"][0]
    tk = k_last @ params["wk_t"] + params["bk"][0]
    attn_in = tq + tk[None]
    score = jnp.tanh(attn_in).reshape(K * BN, -1) @ params["ws"].T + params["bs"]
    q_score = jax.nn.softmax(score, axis=-1)                             # size-1 dim -> 1
    q_score = q_score.reshape(BN, K, 1)                                  # torch .view
    out = jnp.sum(q_score * outs, axis=-2)
    return out.reshape(B, N, H)


if __name__ == "__main__":
    key = jax.random.PRNGKey(0)
    kp, kx = jax.random.split(key)
    params = init_params(kp)

    B, N, K = 2, 4, 8
    x = jax.random.normal(kx, (B, N, K, FEATURE_DIM), dtype=jnp.float32)

    y_ref = reference_forward(x, params)

    # Exact-f32 MXU + f32 gates: tight check against the full pure-JAX reference.
    y_f32 = jax.block_until_ready(lstmha_forward(x, params, mxu_dtype=jnp.float32))
    err_f32 = float(jnp.max(jnp.abs(y_f32 - y_ref)))

    # Default fast path: bf16 MXU operands; bf16 gate activations where the
    # VPU/EUP support them (v6e/v7x), f32 otherwise; f32 cell/accumulator state.
    y_fast = jax.block_until_ready(lstmha_forward(x, params))
    err_fast = float(jnp.max(jnp.abs(y_fast - y_ref)))

    assert y_f32.shape == (B, N, LSTM_H_DIM)
    assert y_fast.shape == (B, N, LSTM_H_DIM)
    if err_f32 < 1e-2 and err_fast < 2.5e-1:
        print("KERNEL_OK")
    else:
        print("MISMATCH max_abs_err f32=", err_f32, " fast=", err_fast)
</pallas_src>

<mosaic_0001>
module attributes {stable_mosaic.version = 11 : i64} {
  func.func @lstmha_kernel(%arg0: i32, %arg1: memref<8x8x29xf32, #tpu.memory_space<vmem>>, %arg2: memref<29x512xf32, #tpu.memory_space<vmem>>, %arg3: memref<128x512xf32, #tpu.memory_space<vmem>>, %arg4: memref<1x512xf32, #tpu.memory_space<vmem>>, %arg5: memref<8x128xf32, #tpu.memory_space<vmem>>, %arg6: memref<56x512xf32, #tpu.memory_space<vmem>>) attributes {dimension_semantics = [#tpu.dimension_semantics<parallel>], iteration_bounds = array<i64: 1>, scalar_prefetch = 0 : i64, scratch_operands = 1 : i64, tpu.core_type = #tpu.core_type<tc>, window_params = [{transform_indices = @transform_0, window_bounds = array<i64: 8, 8, 29>}, {pipeline_mode = #tpu.pipeline_mode<synchronous>, transform_indices = @transform_1, window_bounds = array<i64: 29, 512>}, {pipeline_mode = #tpu.pipeline_mode<synchronous>, transform_indices = @transform_2, window_bounds = array<i64: 128, 512>}, {pipeline_mode = #tpu.pipeline_mode<synchronous>, transform_indices = @transform_3, window_bounds = array<i64: 1, 512>}, {transform_indices = @transform_4, window_bounds = array<i64: 8, 128>}]} {
    %c0 = arith.constant 0 : index
    %c0_0 = arith.constant 0 : index
    %0 = vector.load %arg2[%c0, %c0_0] : memref<29x512xf32, #tpu.memory_space<vmem>>, vector<29x512xf32>
    %c0_1 = arith.constant 0 : index
    %c0_2 = arith.constant 0 : index
    %1 = vector.load %arg3[%c0_1, %c0_2] : memref<128x512xf32, #tpu.memory_space<vmem>>, vector<128x512xf32>
    %c0_3 = arith.constant 0 : index
    %c0_4 = arith.constant 0 : index
    %2 = vector.load %arg4[%c0_3, %c0_4] : memref<1x512xf32, #tpu.memory_space<vmem>>, vector<1x512xf32>
    %c0_5 = arith.constant 0 : index
    %c0_6 = arith.constant 0 : index
    %c0_7 = arith.constant 0 : index
    %3 = vector.load %arg1[%c0_5, %c0_6, %c0_7] : memref<8x8x29xf32, #tpu.memory_space<vmem>>, vector<1x8x29xf32>
    %4 = vector.shape_cast %3 : vector<1x8x29xf32> to vector<8x29xf32>
    %cst = arith.constant dense<0.000000e+00> : vector<8x512xf32>
    %5 = tpu.matmul %4, %0, %cst {dimension_numbers = #tpu.dot_dimension_numbers<[1], [0], [0], [1], [0, 0, 1, 1], [], []>} : vector<8x29xf32>, vector<29x512xf32>, vector<8x512xf32> -> vector<8x512xf32>
    %6 = vector.broadcast %2 : vector<1x512xf32> to vector<8x512xf32>
    %7 = arith.addf %5, %6 : vector<8x512xf32>
    %c1 = arith.constant 1 : index
    %c0_8 = arith.constant 0 : index
    %c0_9 = arith.constant 0 : index
    %8 = vector.load %arg1[%c1, %c0_8, %c0_9] : memref<8x8x29xf32, #tpu.memory_space<vmem>>, vector<7x8x29xf32>
    %9 = vector.shape_cast %8 : vector<7x8x29xf32> to vector<56x29xf32>
    %cst_10 = arith.constant dense<0.000000e+00> : vector<56x512xf32>
    %10 = tpu.matmul %9, %0, %cst_10 {dimension_numbers = #tpu.dot_dimension_numbers<[1], [0], [0], [1], [0, 0, 1, 1], [], []>} : vector<56x29xf32>, vector<29x512xf32>, vector<56x512xf32> -> vector<56x512xf32>
    %11 = vector.broadcast %2 : vector<1x512xf32> to vector<56x512xf32>
    %12 = arith.addf %10, %11 : vector<56x512xf32>
    %c0_11 = arith.constant 0 : index
    %c0_12 = arith.constant 0 : index
    %13 = vector.load %arg6[%c0_11, %c0_12] : memref<56x512xf32, #tpu.memory_space<vmem>>, vector<56x512xf32>
    tpu.vector_store %arg6[%c0_11, %c0_12], %12 {strides = array<i32>} : memref<56x512xf32, #tpu.memory_space<vmem>>, vector<56x512xf32>,
    %14 = vector.extract_strided_slice %7 {offsets = [0, 0], sizes = [8, 128], strides = [1, 1]} : vector<8x512xf32> to vector<8x128xf32>
    %cst_13 = arith.constant 5.000000e-01 : f32
    %15 = vector.broadcast %cst_13 : f32 to vector<8x128xf32>
    %16 = arith.mulf %14, %15 : vector<8x128xf32>
    %17 = math.tanh %16 : vector<8x128xf32>
    %cst_14 = arith.constant 5.000000e-01 : f32
    %18 = vector.broadcast %cst_14 : f32 to vector<8x128xf32>
    %19 = arith.mulf %18, %17 : vector<8x128xf32>
    %cst_15 = arith.constant 5.000000e-01 : f32
    %20 = vector.broadcast %cst_15 : f32 to vector<8x128xf32>
    %21 = arith.addf %19, %20 : vector<8x128xf32>
    %22 = vector.extract_strided_slice %7 {offsets = [0, 256], sizes = [8, 128], strides = [1, 1]} : vector<8x512xf32> to vector<8x128xf32>
    %23 = math.tanh %22 : vector<8x128xf32>
    %24 = vector.extract_strided_slice %7 {offsets = [0, 384], sizes = [8, 128], strides = [1, 1]} : vector<8x512xf32> to vector<8x128xf32>
    %cst_16 = arith.constant 5.000000e-01 : f32
    %25 = vector.broadcast %cst_16 : f32 to vector<8x128xf32>
    %26 = arith.mulf %24, %25 : vector<8x128xf32>
    %27 = math.tanh %26 : vector<8x128xf32>
    %cst_17 = arith.constant 5.000000e-01 : f32
    %28 = vector.broadcast %cst_17 : f32 to vector<8x128xf32>
    %29 = arith.mulf %28, %27 : vector<8x128xf32>
    %cst_18 = arith.constant 5.000000e-01 : f32
    %30 = vector.broadcast %cst_18 : f32 to vector<8x128xf32>
    %31 = arith.addf %29, %30 : vector<8x128xf32>
    %32 = arith.mulf %21, %23 : vector<8x128xf32>
    %33 = math.tanh %32 : vector<8x128xf32>
    %34 = arith.mulf %31, %33 : vector<8x128xf32>
    %cst_19 = arith.constant dense<0.000000e+00> : vector<8x512xf32>
    %35 = tpu.matmul %34, %1, %cst_19 {dimension_numbers = #tpu.dot_dimension_numbers<[1], [0], [0], [1], [0, 0, 1, 1], [], []>} : vector<8x128xf32>, vector<128x512xf32>, vector<8x512xf32> -> vector<8x512xf32>
    %c0_20 = arith.constant 0 : index
    %c0_21 = arith.constant 0 : index
    %36 = vector.load %arg6[%c0_20, %c0_21] : memref<56x512xf32, #tpu.memory_space<vmem>>, vector<8x512xf32>
    %37 = arith.addf %35, %36 : vector<8x512xf32>
    %38 = vector.extract_strided_slice %37 {offsets = [0, 0], sizes = [8, 128], strides = [1, 1]} : vector<8x512xf32> to vector<8x128xf32>
    %cst_22 = arith.constant 5.000000e-01 : f32
    %39 = vector.broadcast %cst_22 : f32 to vector<8x128xf32>
    %40 = arith.mulf %38, %39 : vector<8x128xf32>
    %41 = math.tanh %40 : vector<8x128xf32>
    %cst_23 = arith.constant 5.000000e-01 : f32
    %42 = vector.broadcast %cst_23 : f32 to vector<8x128xf32>
    %43 = arith.mulf %42, %41 : vector<8x128xf32>
    %cst_24 = arith.constant 5.000000e-01 : f32
    %44 = vector.broadcast %cst_24 : f32 to vector<8x128xf32>
    %45 = arith.addf %43, %44 : vector<8x128xf32>
    %46 = vector.extract_strided_slice %37 {offsets = [0, 256], sizes = [8, 128], strides = [1, 1]} : vector<8x512xf32> to vector<8x128xf32>
    %47 = math.tanh %46 : vector<8x128xf32>
    %48 = vector.extract_strided_slice %37 {offsets = [0, 384], sizes = [8, 128], strides = [1, 1]} : vector<8x512xf32> to vector<8x128xf32>
    %cst_25 = arith.constant 5.000000e-01 : f32
    %49 = vector.broadcast %cst_25 : f32 to vector<8x128xf32>
    %50 = arith.mulf %48, %49 : vector<8x128xf32>
    %51 = math.tanh %50 : vector<8x128xf32>
    %cst_26 = arith.constant 5.000000e-01 : f32
    %52 = vector.broadcast %cst_26 : f32 to vector<8x128xf32>
    %53 = arith.mulf %52, %51 : vector<8x128xf32>
    %cst_27 = arith.constant 5.000000e-01 : f32
    %54 = vector.broadcast %cst_27 : f32 to vector<8x128xf32>
    %55 = arith.addf %53, %54 : vector<8x128xf32>
    %56 = vector.extract_strided_slice %37 {offsets = [0, 128], sizes = [8, 128], strides = [1, 1]} : vector<8x512xf32> to vector<8x128xf32>
    %cst_28 = arith.constant 5.000000e-01 : f32
    %57 = vector.broadcast %cst_28 : f32 to vector<8x128xf32>
    %58 = arith.mulf %56, %57 : vector<8x128xf32>
    %59 = math.tanh %58 : vector<8x128xf32>
    %cst_29 = arith.constant 5.000000e-01 : f32
    %60 = vector.broadcast %cst_29 : f32 to vector<8x128xf32>
    %61 = arith.mulf %60, %59 : vector<8x128xf32>
    %cst_30 = arith.constant 5.000000e-01 : f32
    %62 = vector.broadcast %cst_30 : f32 to vector<8x128xf32>
    %63 = arith.addf %61, %62 : vector<8x128xf32>
    %64 = arith.mulf %63, %32 : vector<8x128xf32>
    %65 = arith.mulf %45, %47 : vector<8x128xf32>
    %66 = arith.addf %64, %65 : vector<8x128xf32>
    %67 = math.tanh %66 : vector<8x128xf32>
    %68 = arith.mulf %55, %67 : vector<8x128xf32>
    %69 = arith.addf %34, %68 : vector<8x128xf32>
    %cst_31 = arith.constant dense<0.000000e+00> : vector<8x512xf32>
    %70 = tpu.matmul %68, %1, %cst_31 {dimension_numbers = #tpu.dot_dimension_numbers<[1], [0], [0], [1], [0, 0, 1, 1], [], []>} : vector<8x128xf32>, vector<128x512xf32>, vector<8x512xf32> -> vector<8x512xf32>
    %c8 = arith.constant 8 : index
    %c0_32 = arith.constant 0 : index
    %71 = vector.load %arg6[%c8, %c0_32] : memref<56x512xf32, #tpu.memory_space<vmem>>, vector<8x512xf32>
    %72 = arith.addf %70, %71 : vector<8x512xf32>
    %73 = vector.extract_strided_slice %72 {offsets = [0, 0], sizes = [8, 128], strides = [1, 1]} : vector<8x512xf32> to vector<8x128xf32>
    %cst_33 = arith.constant 5.000000e-01 : f32
    %74 = vector.broadcast %cst_33 : f32 to vector<8x128xf32>
    %75 = arith.mulf %73, %74 : vector<8x128xf32>
    %76 = math.tanh %75 : vector<8x128xf32>
    %cst_34 = arith.constant 5.000000e-01 : f32
    %77 = vector.broadcast %cst_34 : f32 to vector<8x128xf32>
    %78 = arith.mulf %77, %76 : vector<8x128xf32>
    %cst_35 = arith.constant 5.000000e-01 : f32
    %79 = vector.broadcast %cst_35 : f32 to vector<8x128xf32>
    %80 = arith.addf %78, %79 : vector<8x128xf32>
    %81 = vector.extract_strided_slice %72 {offsets = [0, 256], sizes = [8, 128], strides = [1, 1]} : vector<8x512xf32> to vector<8x128xf32>
    %82 = math.tanh %81 : vector<8x128xf32>
    %83 = vector.extract_strided_slice %72 {offsets = [0, 384], sizes = [8, 128], strides = [1, 1]} : vector<8x512xf32> to vector<8x128xf32>
    %cst_36 = arith.constant 5.000000e-01 : f32
    %84 = vector.broadcast %cst_36 : f32 to vector<8x128xf32>
    %85 = arith.mulf %83, %84 : vector<8x128xf32>
    %86 = math.tanh %85 : vector<8x128xf32>
    %cst_37 = arith.constant 5.000000e-01 : f32
    %87 = vector.broadcast %cst_37 : f32 to vector<8x128xf32>
    %88 = arith.mulf %87, %86 : vector<8x128xf32>
    %cst_38 = arith.constant 5.000000e-01 : f32
    %89 = vector.broadcast %cst_38 : f32 to vector<8x128xf32>
    %90 = arith.addf %88, %89 : vector<8x128xf32>
    %91 = vector.extract_strided_slice %72 {offsets = [0, 128], sizes = [8, 128], strides = [1, 1]} : vector<8x512xf32> to vector<8x128xf32>
    %cst_39 = arith.constant 5.000000e-01 : f32
    %92 = vector.broadcast %cst_39 : f32 to vector<8x128xf32>
    %93 = arith.mulf %91, %92 : vector<8x128xf32>
    %94 = math.tanh %93 : vector<8x128xf32>
    %cst_40 = arith.constant 5.000000e-01 : f32
    %95 = vector.broadcast %cst_40 : f32 to vector<8x128xf32>
    %96 = arith.mulf %95, %94 : vector<8x128xf32>
    %cst_41 = arith.constant 5.000000e-01 : f32
    %97 = vector.broadcast %cst_41 : f32 to vector<8x128xf32>
    %98 = arith.addf %96, %97 : vector<8x128xf32>
    %99 = arith.mulf %98, %66 : vector<8x128xf32>
    %100 = arith.mulf %80, %82 : vector<8x128xf32>
    %101 = arith.addf %99, %100 : vector<8x128xf32>
    %102 = math.tanh %101 : vector<8x128xf32>
    %103 = arith.mulf %90, %102 : vector<8x128xf32>
    %104 = arith.addf %69, %103 : vector<8x128xf32>
    %cst_42 = arith.constant dense<0.000000e+00> : vector<8x512xf32>
    %105 = tpu.matmul %103, %1, %cst_42 {dimension_numbers = #tpu.dot_dimension_numbers<[1], [0], [0], [1], [0, 0, 1, 1], [], []>} : vector<8x128xf32>, vector<128x512xf32>, vector<8x512xf32> -> vector<8x512xf32>
    %c16 = arith.constant 16 : index
    %c0_43 = arith.constant 0 : index
    %106 = vector.load %arg6[%c16, %c0_43] : memref<56x512xf32, #tpu.memory_space<vmem>>, vector<8x512xf32>
    %107 = arith.addf %105, %106 : vector<8x512xf32>
    %108 = vector.extract_strided_slice %107 {offsets = [0, 0], sizes = [8, 128], strides = [1, 1]} : vector<8x512xf32> to vector<8x128xf32>
    %cst_44 = arith.constant 5.000000e-01 : f32
    %109 = vector.broadcast %cst_44 : f32 to vector<8x128xf32>
    %110 = arith.mulf %108, %109 : vector<8x128xf32>
    %111 = math.tanh %110 : vector<8x128xf32>
    %cst_45 = arith.constant 5.000000e-01 : f32
    %112 = vector.broadcast %cst_45 : f32 to vector<8x128xf32>
    %113 = arith.mulf %112, %111 : vector<8x128xf32>
    %cst_46 = arith.constant 5.000000e-01 : f32
    %114 = vector.broadcast %cst_46 : f32 to vector<8x128xf32>
    %115 = arith.addf %113, %114 : vector<8x128xf32>
    %116 = vector.extract_strided_slice %107 {offsets = [0, 256], sizes = [8, 128], strides = [1, 1]} : vector<8x512xf32> to vector<8x128xf32>
    %117 = math.tanh %116 : vector<8x128xf32>
    %118 = vector.extract_strided_slice %107 {offsets = [0, 384], sizes = [8, 128], strides = [1, 1]} : vector<8x512xf32> to vector<8x128xf32>
    %cst_47 = arith.constant 5.000000e-01 : f32
    %119 = vector.broadcast %cst_47 : f32 to vector<8x128xf32>
    %120 = arith.mulf %118, %119 : vector<8x128xf32>
    %121 = math.tanh %120 : vector<8x128xf32>
    %cst_48 = arith.constant 5.000000e-01 : f32
    %122 = vector.broadcast %cst_48 : f32 to vector<8x128xf32>
    %123 = arith.mulf %122, %121 : vector<8x128xf32>
    %cst_49 = arith.constant 5.000000e-01 : f32
    %124 = vector.broadcast %cst_49 : f32 to vector<8x128xf32>
    %125 = arith.addf %123, %124 : vector<8x128xf32>
    %126 = vector.extract_strided_slice %107 {offsets = [0, 128], sizes = [8, 128], strides = [1, 1]} : vector<8x512xf32> to vector<8x128xf32>
    %cst_50 = arith.constant 5.000000e-01 : f32
    %127 = vector.broadcast %cst_50 : f32 to vector<8x128xf32>
    %128 = arith.mulf %126, %127 : vector<8x128xf32>
    %129 = math.tanh %128 : vector<8x128xf32>
    %cst_51 = arith.constant 5.000000e-01 : f32
    %130 = vector.broadcast %cst_51 : f32 to vector<8x128xf32>
    %131 = arith.mulf %130, %129 : vector<8x128xf32>
    %cst_52 = arith.constant 5.000000e-01 : f32
    %132 = vector.broadcast %cst_52 : f32 to vector<8x128xf32>
    %133 = arith.addf %131, %132 : vector<8x128xf32>
    %134 = arith.mulf %133, %101 : vector<8x128xf32>
    %135 = arith.mulf %115, %117 : vector<8x128xf32>
    %136 = arith.addf %134, %135 : vector<8x128xf32>
    %137 = math.tanh %136 : vector<8x128xf32>
    %138 = arith.mulf %125, %137 : vector<8x128xf32>
    %139 = arith.addf %104, %138 : vector<8x128xf32>
    %cst_53 = arith.constant dense<0.000000e+00> : vector<8x512xf32>
    %140 = tpu.matmul %138, %1, %cst_53 {dimension_numbers = #tpu.dot_dimension_numbers<[1], [0], [0], [1], [0, 0, 1, 1], [], []>} : vector<8x128xf32>, vector<128x512xf32>, vector<8x512xf32> -> vector<8x512xf32>
    %c24 = arith.constant 24 : index
    %c0_54 = arith.constant 0 : index
    %141 = vector.load %arg6[%c24, %c0_54] : memref<56x512xf32, #tpu.memory_space<vmem>>, vector<8x512xf32>
    %142 = arith.addf %140, %141 : vector<8x512xf32>
    %143 = vector.extract_strided_slice %142 {offsets = [0, 0], sizes = [8, 128], strides = [1, 1]} : vector<8x512xf32> to vector<8x128xf32>
    %cst_55 = arith.constant 5.000000e-01 : f32
    %144 = vector.broadcast %cst_55 : f32 to vector<8x128xf32>
    %145 = arith.mulf %143, %144 : vector<8x128xf32>
    %146 = math.tanh %145 : vector<8x128xf32>
    %cst_56 = arith.constant 5.000000e-01 : f32
    %147 = vector.broadcast %cst_56 : f32 to vector<8x128xf32>
    %148 = arith.mulf %147, %146 : vector<8x128xf32>
    %cst_57 = arith.constant 5.000000e-01 : f32
    %149 = vector.broadcast %cst_57 : f32 to vector<8x128xf32>
    %150 = arith.addf %148, %149 : vector<8x128xf32>
    %151 = vector.extract_strided_slice %142 {offsets = [0, 256], sizes = [8, 128], strides = [1, 1]} : vector<8x512xf32> to vector<8x128xf32>
    %152 = math.tanh %151 : vector<8x128xf32>
    %153 = vector.extract_strided_slice %142 {offsets = [0, 384], sizes = [8, 128], strides = [1, 1]} : vector<8x512xf32> to vector<8x128xf32>
    %cst_58 = arith.constant 5.000000e-01 : f32
    %154 = vector.broadcast %cst_58 : f32 to vector<8x128xf32>
    %155 = arith.mulf %153, %154 : vector<8x128xf32>
    %156 = math.tanh %155 : vector<8x128xf32>
    %cst_59 = arith.constant 5.000000e-01 : f32
    %157 = vector.broadcast %cst_59 : f32 to vector<8x128xf32>
    %158 = arith.mulf %157, %156 : vector<8x128xf32>
    %cst_60 = arith.constant 5.000000e-01 : f32
    %159 = vector.broadcast %cst_60 : f32 to vector<8x128xf32>
    %160 = arith.addf %158, %159 : vector<8x128xf32>
    %161 = vector.extract_strided_slice %142 {offsets = [0, 128], sizes = [8, 128], strides = [1, 1]} : vector<8x512xf32> to vector<8x128xf32>
    %cst_61 = arith.constant 5.000000e-01 : f32
    %162 = vector.broadcast %cst_61 : f32 to vector<8x128xf32>
    %163 = arith.mulf %161, %162 : vector<8x128xf32>
    %164 = math.tanh %163 : vector<8x128xf32>
    %cst_62 = arith.constant 5.000000e-01 : f32
    %165 = vector.broadcast %cst_62 : f32 to vector<8x128xf32>
    %166 = arith.mulf %165, %164 : vector<8x128xf32>
    %cst_63 = arith.constant 5.000000e-01 : f32
    %167 = vector.broadcast %cst_63 : f32 to vector<8x128xf32>
    %168 = arith.addf %166, %167 : vector<8x128xf32>
    %169 = arith.mulf %168, %136 : vector<8x128xf32>
    %170 = arith.mulf %150, %152 : vector<8x128xf32>
    %171 = arith.addf %169, %170 : vector<8x128xf32>
    %172 = math.tanh %171 : vector<8x128xf32>
    %173 = arith.mulf %160, %172 : vector<8x128xf32>
    %174 = arith.addf %139, %173 : vector<8x128xf32>
    %cst_64 = arith.constant dense<0.000000e+00> : vector<8x512xf32>
    %175 = tpu.matmul %173, %1, %cst_64 {dimension_numbers = #tpu.dot_dimension_numbers<[1], [0], [0], [1], [0, 0, 1, 1], [], []>} : vector<8x128xf32>, vector<128x512xf32>, vector<8x512xf32> -> vector<8x512xf32>
    %c32 = arith.constant 32 : index
    %c0_65 = arith.constant 0 : index
    %176 = vector.load %arg6[%c32, %c0_65] : memref<56x512xf32, #tpu.memory_space<vmem>>, vector<8x512xf32>
    %177 = arith.addf %175, %176 : vector<8x512xf32>
    %178 = vector.extract_strided_slice %177 {offsets = [0, 0], sizes = [8, 128], strides = [1, 1]} : vector<8x512xf32> to vector<8x128xf32>
    %cst_66 = arith.constant 5.000000e-01 : f32
    %179 = vector.broadcast %cst_66 : f32 to vector<8x128xf32>
    %180 = arith.mulf %178, %179 : vector<8x128xf32>
    %181 = math.tanh %180 : vector<8x128xf32>
    %cst_67 = arith.constant 5.000000e-01 : f32
    %182 = vector.broadcast %cst_67 : f32 to vector<8x128xf32>
    %183 = arith.mulf %182, %181 : vector<8x128xf32>
    %cst_68 = arith.constant 5.000000e-01 : f32
    %184 = vector.broadcast %cst_68 : f32 to vector<8x128xf32>
    %185 = arith.addf %183, %184 : vector<8x128xf32>
    %186 = vector.extract_strided_slice %177 {offsets = [0, 256], sizes = [8, 128], strides = [1, 1]} : vector<8x512xf32> to vector<8x128xf32>
    %187 = math.tanh %186 : vector<8x128xf32>
    %188 = vector.extract_strided_slice %177 {offsets = [0, 384], sizes = [8, 128], strides = [1, 1]} : vector<8x512xf32> to vector<8x128xf32>
    %cst_69 = arith.constant 5.000000e-01 : f32
    %189 = vector.broadcast %cst_69 : f32 to vector<8x128xf32>
    %190 = arith.mulf %188, %189 : vector<8x128xf32>
    %191 = math.tanh %190 : vector<8x128xf32>
    %cst_70 = arith.constant 5.000000e-01 : f32
    %192 = vector.broadcast %cst_70 : f32 to vector<8x128xf32>
    %193 = arith.mulf %192, %191 : vector<8x128xf32>
    %cst_71 = arith.constant 5.000000e-01 : f32
    %194 = vector.broadcast %cst_71 : f32 to vector<8x128xf32>
    %195 = arith.addf %193, %194 : vector<8x128xf32>
    %196 = vector.extract_strided_slice %177 {offsets = [0, 128], sizes = [8, 128], strides = [1, 1]} : vector<8x512xf32> to vector<8x128xf32>
    %cst_72 = arith.constant 5.000000e-01 : f32
    %197 = vector.broadcast %cst_72 : f32 to vector<8x128xf32>
    %198 = arith.mulf %196, %197 : vector<8x128xf32>
    %199 = math.tanh %198 : vector<8x128xf32>
    %cst_73 = arith.constant 5.000000e-01 : f32
    %200 = vector.broadcast %cst_73 : f32 to vector<8x128xf32>
    %201 = arith.mulf %200, %199 : vector<8x128xf32>
    %cst_74 = arith.constant 5.000000e-01 : f32
    %202 = vector.broadcast %cst_74 : f32 to vector<8x128xf32>
    %203 = arith.addf %201, %202 : vector<8x128xf32>
    %204 = arith.mulf %203, %171 : vector<8x128xf32>
    %205 = arith.mulf %185, %187 : vector<8x128xf32>
    %206 = arith.addf %204, %205 : vector<8x128xf32>
    %207 = math.tanh %206 : vector<8x128xf32>
    %208 = arith.mulf %195, %207 : vector<8x128xf32>
    %209 = arith.addf %174, %208 : vector<8x128xf32>
    %cst_75 = arith.constant dense<0.000000e+00> : vector<8x512xf32>
    %210 = tpu.matmul %208, %1, %cst_75 {dimension_numbers = #tpu.dot_dimension_numbers<[1], [0], [0], [1], [0, 0, 1, 1], [], []>} : vector<8x128xf32>, vector<128x512xf32>, vector<8x512xf32> -> vector<8x512xf32>
    %c40 = arith.constant 40 : index
    %c0_76 = arith.constant 0 : index
    %211 = vector.load %arg6[%c40, %c0_76] : memref<56x512xf32, #tpu.memory_space<vmem>>, vector<8x512xf32>
    %212 = arith.addf %210, %211 : vector<8x512xf32>
    %213 = vector.extract_strided_slice %212 {offsets = [0, 0], sizes = [8, 128], strides = [1, 1]} : vector<8x512xf32> to vector<8x128xf32>
    %cst_77 = arith.constant 5.000000e-01 : f32
    %214 = vector.broadcast %cst_77 : f32 to vector<8x128xf32>
    %215 = arith.mulf %213, %214 : vector<8x128xf32>
    %216 = math.tanh %215 : vector<8x128xf32>
    %cst_78 = arith.constant 5.000000e-01 : f32
    %217 = vector.broadcast %cst_78 : f32 to vector<8x128xf32>
    %218 = arith.mulf %217, %216 : vector<8x128xf32>
    %cst_79 = arith.constant 5.000000e-01 : f32
    %219 = vector.broadcast %cst_79 : f32 to vector<8x128xf32>
    %220 = arith.addf %218, %219 : vector<8x128xf32>
    %221 = vector.extract_strided_slice %212 {offsets = [0, 256], sizes = [8, 128], strides = [1, 1]} : vector<8x512xf32> to vector<8x128xf32>
    %222 = math.tanh %221 : vector<8x128xf32>
    %223 = vector.extract_strided_slice %212 {offsets = [0, 384], sizes = [8, 128], strides = [1, 1]} : vector<8x512xf32> to vector<8x128xf32>
    %cst_80 = arith.constant 5.000000e-01 : f32
    %224 = vector.broadcast %cst_80 : f32 to vector<8x128xf32>
    %225 = arith.mulf %223, %224 : vector<8x128xf32>
    %226 = math.tanh %225 : vector<8x128xf32>
    %cst_81 = arith.constant 5.000000e-01 : f32
    %227 = vector.broadcast %cst_81 : f32 to vector<8x128xf32>
    %228 = arith.mulf %227, %226 : vector<8x128xf32>
    %cst_82 = arith.constant 5.000000e-01 : f32
    %229 = vector.broadcast %cst_82 : f32 to vector<8x128xf32>
    %230 = arith.addf %228, %229 : vector<8x128xf32>
    %231 = vector.extract_strided_slice %212 {offsets = [0, 128], sizes = [8, 128], strides = [1, 1]} : vector<8x512xf32> to vector<8x128xf32>
    %cst_83 = arith.constant 5.000000e-01 : f32
    %232 = vector.broadcast %cst_83 : f32 to vector<8x128xf32>
    %233 = arith.mulf %231, %232 : vector<8x128xf32>
    %234 = math.tanh %233 : vector<8x128xf32>
    %cst_84 = arith.constant 5.000000e-01 : f32
    %235 = vector.broadcast %cst_84 : f32 to vector<8x128xf32>
    %236 = arith.mulf %235, %234 : vector<8x128xf32>
    %cst_85 = arith.constant 5.000000e-01 : f32
    %237 = vector.broadcast %cst_85 : f32 to vector<8x128xf32>
    %238 = arith.addf %236, %237 : vector<8x128xf32>
    %239 = arith.mulf %238, %206 : vector<8x128xf32>
    %240 = arith.mulf %220, %222 : vector<8x128xf32>
    %241 = arith.addf %239, %240 : vector<8x128xf32>
    %242 = math.tanh %241 : vector<8x128xf32>
    %243 = arith.mulf %230, %242 : vector<8x128xf32>
    %244 = arith.addf %209, %243 : vector<8x128xf32>
    %cst_86 = arith.constant dense<0.000000e+00> : vector<8x512xf32>
    %245 = tpu.matmul %243, %1, %cst_86 {dimension_numbers = #tpu.dot_dimension_numbers<[1], [0], [0], [1], [0, 0, 1, 1], [], []>} : vector<8x128xf32>, vector<128x512xf32>, vector<8x512xf32> -> vector<8x512xf32>
    %c48 = arith.constant 48 : index
    %c0_87 = arith.constant 0 : index
    %246 = vector.load %arg6[%c48, %c0_87] : memref<56x512xf32, #tpu.memory_space<vmem>>, vector<8x512xf32>
    %247 = arith.addf %245, %246 : vector<8x512xf32>
    %248 = vector.extract_strided_slice %247 {offsets = [0, 0], sizes = [8, 128], strides = [1, 1]} : vector<8x512xf32> to vector<8x128xf32>
    %cst_88 = arith.constant 5.000000e-01 : f32
    %249 = vector.broadcast %cst_88 : f32 to vector<8x128xf32>
    %250 = arith.mulf %248, %249 : vector<8x128xf32>
    %251 = math.tanh %250 : vector<8x128xf32>
    %cst_89 = arith.constant 5.000000e-01 : f32
    %252 = vector.broadcast %cst_89 : f32 to vector<8x128xf32>
    %253 = arith.mulf %252, %251 : vector<8x128xf32>
    %cst_90 = arith.constant 5.000000e-01 : f32
    %254 = vector.broadcast %cst_90 : f32 to vector<8x128xf32>
    %255 = arith.addf %253, %254 : vector<8x128xf32>
    %256 = vector.extract_strided_slice %247 {offsets = [0, 256], sizes = [8, 128], strides = [1, 1]} : vector<8x512xf32> to vector<8x128xf32>
    %257 = math.tanh %256 : vector<8x128xf32>
    %258 = vector.extract_strided_slice %247 {offsets = [0, 384], sizes = [8, 128], strides = [1, 1]} : vector<8x512xf32> to vector<8x128xf32>
    %cst_91 = arith.constant 5.000000e-01 : f32
    %259 = vector.broadcast %cst_91 : f32 to vector<8x128xf32>
    %260 = arith.mulf %258, %259 : vector<8x128xf32>
    %261 = math.tanh %260 : vector<8x128xf32>
    %cst_92 = arith.constant 5.000000e-01 : f32
    %262 = vector.broadcast %cst_92 : f32 to vector<8x128xf32>
    %263 = arith.mulf %262, %261 : vector<8x128xf32>
    %cst_93 = arith.constant 5.000000e-01 : f32
    %264 = vector.broadcast %cst_93 : f32 to vector<8x128xf32>
    %265 = arith.addf %263, %264 : vector<8x128xf32>
    %266 = vector.extract_strided_slice %247 {offsets = [0, 128], sizes = [8, 128], strides = [1, 1]} : vector<8x512xf32> to vector<8x128xf32>
    %cst_94 = arith.constant 5.000000e-01 : f32
    %267 = vector.broadcast %cst_94 : f32 to vector<8x128xf32>
    %268 = arith.mulf %266, %267 : vector<8x128xf32>
    %269 = math.tanh %268 : vector<8x128xf32>
    %cst_95 = arith.constant 5.000000e-01 : f32
    %270 = vector.broadcast %cst_95 : f32 to vector<8x128xf32>
    %271 = arith.mulf %270, %269 : vector<8x128xf32>
    %cst_96 = arith.constant 5.000000e-01 : f32
    %272 = vector.broadcast %cst_96 : f32 to vector<8x128xf32>
    %273 = arith.addf %271, %272 : vector<8x128xf32>
    %274 = arith.mulf %273, %241 : vector<8x128xf32>
    %275 = arith.mulf %255, %257 : vector<8x128xf32>
    %276 = arith.addf %274, %275 : vector<8x128xf32>
    %277 = math.tanh %276 : vector<8x128xf32>
    %278 = arith.mulf %265, %277 : vector<8x128xf32>
    %279 = arith.addf %244, %278 : vector<8x128xf32>
    %c0_97 = arith.constant 0 : index
    %c0_98 = arith.constant 0 : index
    %280 = vector.load %arg5[%c0_97, %c0_98] : memref<8x128xf32, #tpu.memory_space<vmem>>, vector<8x128xf32>
    tpu.vector_store %arg5[%c0_97, %c0_98], %279 {strides = array<i32>} : memref<8x128xf32, #tpu.memory_space<vmem>>, vector<8x128xf32>,
    return
  }
  func.func @transform_0(%arg0: i32) -> (i32, i32, i32) {
    %c0_i32 = arith.constant 0 : i32
    %c0_i32_0 = arith.constant 0 : i32
    %c0_i32_1 = arith.constant 0 : i32
    return %c0_i32, %arg0, %c0_i32_0 : i32, i32, i32
  }
  func.func @transform_1(%arg0: i32) -> (i32, i32) {
    %c0_i32 = arith.constant 0 : i32
    %c0_i32_0 = arith.constant 0 : i32
    %c0_i32_1 = arith.constant 0 : i32
    return %c0_i32, %c0_i32_0 : i32, i32
  }
  func.func @transform_2(%arg0: i32) -> (i32, i32) {
    %c0_i32 = arith.constant 0 : i32
    %c0_i32_0 = arith.constant 0 : i32
    %c0_i32_1 = arith.constant 0 : i32
    return %c0_i32, %c0_i32_0 : i32, i32
  }
  func.func @transform_3(%arg0: i32) -> (i32, i32) {
    %c0_i32 = arith.constant 0 : i32
    %c0_i32_0 = arith.constant 0 : i32
    %c0_i32_1 = arith.constant 0 : i32
    return %c0_i32, %c0_i32_0 : i32, i32
  }
  func.func @transform_4(%arg0: i32) -> (i32, i32) {
    %c0_i32 = arith.constant 0 : i32
    %c0_i32_0 = arith.constant 0 : i32
    return %arg0, %c0_i32 : i32, i32
  }
}

</mosaic_0001>

<llo_original>
// kernel: tpu_custom_call.1
$region0: #{tpu_custom_call.1}
  #allocation0 [shape = 'u32[]', space=smem, size = 0x4, offset = 0x4, fixed_abs, tag = 'smem constant byte address 0x4 - core index']
  #allocation1 [shape = 'u32[72,128]{1,0:T(1,128)}', space=vmem, size = 0x9000, scoped, tag = 'internal scratch']
  #allocation2 [shape = 'f32[56,512]{1,0:T(8,128)}', space=vmem, size = 0x1c000, scoped, tag = 'scratch operand']
  %s0 = inlined_call_operand.hbm [shape: f32[8,8,29], index: 0, kind: input, shape index: {}]
  %s1 = inlined_call_operand.hbm [shape: f32[29,512], index: 1, kind: input, shape index: {}]
  %s2 = inlined_call_operand.hbm [shape: f32[128,512], index: 2, kind: input, shape index: {}]
  %s3 = inlined_call_operand.hbm [shape: f32[1,512], index: 3, kind: input, shape index: {}]
  %s4 = inlined_call_operand.hbm [shape: f32[8,128], index: 4, kind: output, shape index: {}]
  %s5 = sld [smem:[#allocation0]]
  $region42: #{tpu_custom_call.1} parent=0
    _
  %s7 = ssub.s32 1, %s5
  %s8 = scalar_select 0, %s7, %s5
  $region1: #{tpu_custom_call.1} parent=0
    #allocation3 [shape = 'u8[32768]{0}', space=vmem, size = 0x8000, scoped, tag = 'input window, operand 0, single buffered']
    #allocation4 [shape = 's32[1]{0}', space=sflag, size = 0x4, scoped, tag = 'scoped memory for tpu_custom_call.1']
    #allocation5 [shape = 's32[1]{0}', space=sflag, size = 0x4, scoped, tag = 'scoped memory for tpu_custom_call.1']
    #allocation6 [shape = 'u8[65536]{0}', space=vmem, size = 0x10000, scoped, tag = 'input window, operand 1, single buffered']
    #allocation7 [shape = 's32[1]{0}', space=sflag, size = 0x4, scoped, tag = 'scoped memory for tpu_custom_call.1']
    #allocation8 [shape = 'u8[262144]{0}', space=vmem, size = 0x40000, scoped, tag = 'input window, operand 2, single buffered']
    #allocation9 [shape = 'u8[2048]{0}', space=vmem, size = 0x800, scoped, tag = 'input window, operand 3, single buffered']
    #allocation10 [shape = 's32[1]{0}', space=sflag, size = 0x4, scoped, tag = 'scoped memory for tpu_custom_call.1']
    #allocation11 [shape = 'u8[4096]{0}', space=vmem, size = 0x1000, scoped, tag = 'output window, operand 0, single buffered']
    %9 = vsyncpa [#allocation4], 0
    %10 = vsyncpa [#allocation7], 0
    %11 = vsyncpa [#allocation10], 0
    %12 = vsyncpa [#allocation5], 0
    // Predicated region
    $region2: #{tpu_custom_call.1} parent=1 // pred_check
      _
    $region3: #{tpu_custom_call.1} parent=1 // pred_check_branch
      %14 = sbr.rel (0) target = $region5
    $region4: #{tpu_custom_call.1} parent=1 // pred_region
      %16 = vsyncadd [#allocation4], 0
      %s17 = sshll.u32 %s0, 4
      %s18 = int_to_ptr.hbm [resolvable:$true] %s17
      %s19 = sshll.u32 [#allocation3], 4
      %s20 = int_to_ptr.vmem [resolvable:$true] %s19
      %25 = dma.hbm_to_vmem [thread:$0]  %s18, 1024, %s20, [#allocation4], 128, 128, 8
    $region5: #{tpu_custom_call.1} parent=1 // pred_fallthru
      _
    // Predicated region
    $region6: #{tpu_custom_call.1} parent=1 // pred_check
      _
    $region7: #{tpu_custom_call.1} parent=1 // pred_check_branch
      %27 = sbr.rel (0) target = $region9
    $region8: #{tpu_custom_call.1} parent=1 // pred_region
      %29 = vsyncadd [#allocation7], 0
      %s30 = sshll.u32 %s1, 4
      %s31 = int_to_ptr.hbm [resolvable:$true] %s30
      %s32 = sshll.u32 [#allocation6], 4
      %s33 = int_to_ptr.vmem [resolvable:$true] %s32
      %38 = dma.hbm_to_vmem [thread:$0]  %s31, 2048, %s33, [#allocation7], 512, 512, 32
    $region9: #{tpu_custom_call.1} parent=1 // pred_fallthru
      _
    // Predicated region
    $region10: #{tpu_custom_call.1} parent=1 // pred_check
      _
    $region11: #{tpu_custom_call.1} parent=1 // pred_check_branch
      %40 = sbr.rel (0) target = $region13
    $region12: #{tpu_custom_call.1} parent=1 // pred_region
      %42 = vsyncadd [#allocation7], 0
      %s43 = sshll.u32 %s2, 4
      %s44 = int_to_ptr.hbm [resolvable:$true] %s43
      %s45 = sshll.u32 [#allocation8], 4
      %s46 = int_to_ptr.vmem [resolvable:$true] %s45
      %51 = dma.hbm_to_vmem [thread:$0]  %s44, 8192, %s46, [#allocation7], 512, 512, 32
    $region13: #{tpu_custom_call.1} parent=1 // pred_fallthru
      _
    // Predicated region
    $region14: #{tpu_custom_call.1} parent=1 // pred_check
      _
    $region15: #{tpu_custom_call.1} parent=1 // pred_check_branch
      %53 = sbr.rel (0) target = $region17
    $region16: #{tpu_custom_call.1} parent=1 // pred_region
      %55 = vsyncadd [#allocation10], 0
      %s57 = sshll.u32 %s3, 4
      %s58 = int_to_ptr.hbm [resolvable:$true] %s57
      %s59 = sshll.u32 [#allocation9], 4
      %s60 = int_to_ptr.vmem [resolvable:$true] %s59
      %62 = dma.hbm_to_vmem [thread:$0]  %s58, 64, %s60, [#allocation10]
    $region17: #{tpu_custom_call.1} parent=1 // pred_fallthru
      _
    // Predicated region
    $region18: #{tpu_custom_call.1} parent=1 // pred_check
      _
    $region19: #{tpu_custom_call.1} parent=1 // pred_check_branch
      %64 = sbr.rel (0) target = $region21
    $region20: #{tpu_custom_call.1} parent=1 // pred_region
      %66 = dma.done [#allocation4], 1024
    $region21: #{tpu_custom_call.1} parent=1 // pred_fallthru
      _
    // Predicated region
    $region22: #{tpu_custom_call.1} parent=1 // pred_check
      _
    $region23: #{tpu_custom_call.1} parent=1 // pred_check_branch
      %68 = sbr.rel (0) target = $region25
    $region24: #{tpu_custom_call.1} parent=1 // pred_region
      %70 = dma.done [#allocation7], 2048
    $region25: #{tpu_custom_call.1} parent=1 // pred_fallthru
      _
    // Predicated region
    $region26: #{tpu_custom_call.1} parent=1 // pred_check
      _
    $region27: #{tpu_custom_call.1} parent=1 // pred_check_branch
      %72 = sbr.rel (0) target = $region29
    $region28: #{tpu_custom_call.1} parent=1 // pred_region
      %74 = dma.done [#allocation7], 8192
    $region29: #{tpu_custom_call.1} parent=1 // pred_fallthru
      _
    // Predicated region
    $region30: #{tpu_custom_call.1} parent=1 // pred_check
      _
    $region31: #{tpu_custom_call.1} parent=1 // pred_check_branch
      %76 = sbr.rel (0) target = $region33
    $region32: #{tpu_custom_call.1} parent=1 // pred_region
      %78 = dma.done [#allocation10], 64
    $region33: #{tpu_custom_call.1} parent=1 // pred_fallthru
      _
    %v79 = vld [vmem:[#allocation6] sm:$0xff]
    %v80 = vld [vmem:[#allocation6 + $0x8] sm:$0xff]
    %v81 = vld [vmem:[#allocation6 + $0x10] sm:$0xff]
    %v82 = vld [vmem:[#allocation6 + $0x18] sm:$0xff]
    %v83 = vld [vmem:[#allocation6 + $0x20] sm:$0xff]
    %v84 = vld [vmem:[#allocation6 + $0x28] sm:$0xff]
    %v85 = vld [vmem:[#allocation6 + $0x30] sm:$0xff]
    %v86 = vld [vmem:[#allocation6 + $0x38] sm:$0xff]
    %v87 = vld [vmem:[#allocation6 + $0x40] sm:$0xff]
    %v88 = vld [vmem:[#allocation6 + $0x48] sm:$0xff]
    %v89 = vld [vmem:[#allocation6 + $0x50] sm:$0xff]
    %v90 = vld [vmem:[#allocation6 + $0x58] sm:$0xff]
    %v91 = vld [vmem:[#allocation6 + $0x60] sm:$0x1f]
    %v92 = vld [vmem:[#allocation6 + $0x68] sm:$0x1f]
    %v93 = vld [vmem:[#allocation6 + $0x70] sm:$0x1f]
    %v94 = vld [vmem:[#allocation6 + $0x78] sm:$0x1f]
    %v95 = vld [vmem:[#allocation8] sm:$0xff]
    %v96 = vld [vmem:[#allocation8 + $0x8] sm:$0xff]
    %v97 = vld [vmem:[#allocation8 + $0x10] sm:$0xff]
    %v98 = vld [vmem:[#allocation8 + $0x18] sm:$0xff]
    %v99 = vld [vmem:[#allocation8 + $0x20] sm:$0xff]
    %v100 = vld [vmem:[#allocation8 + $0x28] sm:$0xff]
    %v101 = vld [vmem:[#allocation8 + $0x30] sm:$0xff]
    %v102 = vld [vmem:[#allocation8 + $0x38] sm:$0xff]
    %v103 = vld [vmem:[#allocation8 + $0x40] sm:$0xff]
    %v104 = vld [vmem:[#allocation8 + $0x48] sm:$0xff]
    %v105 = vld [vmem:[#allocation8 + $0x50] sm:$0xff]
    %v106 = vld [vmem:[#allocation8 + $0x58] sm:$0xff]
    %v107 = vld [vmem:[#allocation8 + $0x60] sm:$0xff]
    %v108 = vld [vmem:[#allocation8 + $0x68] sm:$0xff]
    %v109 = vld [vmem:[#allocation8 + $0x70] sm:$0xff]
    %v110 = vld [vmem:[#allocation8 + $0x78] sm:$0xff]
    %v111 = vld [vmem:[#allocation8 + $0x80] sm:$0xff]
    %v112 = vld [vmem:[#allocation8 + $0x88] sm:$0xff]
    %v113 = vld [vmem:[#allocation8 + $0x90] sm:$0xff]
    %v114 = vld [vmem:[#allocation8 + $0x98] sm:$0xff]
    %v115 = vld [vmem:[#allocation8 + $0xa0] sm:$0xff]
    %v116 = vld [vmem:[#allocation8 + $0xa8] sm:$0xff]
    %v117 = vld [vmem:[#allocation8 + $0xb0] sm:$0xff]
    %v118 = vld [vmem:[#allocation8 + $0xb8] sm:$0xff]
    %v119 = vld [vmem:[#allocation8 + $0xc0] sm:$0xff]
    %v120 = vld [vmem:[#allocation8 + $0xc8] sm:$0xff]
    %v121 = vld [vmem:[#allocation8 + $0xd0] sm:$0xff]
    %v122 = vld [vmem:[#allocation8 + $0xd8] sm:$0xff]
    %v123 = vld [vmem:[#allocation8 + $0xe0] sm:$0xff]
    %v124 = vld [vmem:[#allocation8 + $0xe8] sm:$0xff]
    %v125 = vld [vmem:[#allocation8 + $0xf0] sm:$0xff]
    %v126 = vld [vmem:[#allocation8 + $0xf8] sm:$0xff]
    %v127 = vld [vmem:[#allocation8 + $0x100] sm:$0xff]
    %v128 = vld [vmem:[#allocation8 + $0x108] sm:$0xff]
    %v129 = vld [vmem:[#allocation8 + $0x110] sm:$0xff]
    %v130 = vld [vmem:[#allocation8 + $0x118] sm:$0xff]
    %v131 = vld [vmem:[#allocation8 + $0x120] sm:$0xff]
    %v132 = vld [vmem:[#allocation8 + $0x128] sm:$0xff]
    %v133 = vld [vmem:[#allocation8 + $0x130] sm:$0xff]
    %v134 = vld [vmem:[#allocation8 + $0x138] sm:$0xff]
    %v135 = vld [vmem:[#allocation8 + $0x140] sm:$0xff]
    %v136 = vld [vmem:[#allocation8 + $0x148] sm:$0xff]
    %v137 = vld [vmem:[#allocation8 + $0x150] sm:$0xff]
    %v138 = vld [vmem:[#allocation8 + $0x158] sm:$0xff]
    %v139 = vld [vmem:[#allocation8 + $0x160] sm:$0xff]
    %v140 = vld [vmem:[#allocation8 + $0x168] sm:$0xff]
    %v141 = vld [vmem:[#allocation8 + $0x170] sm:$0xff]
    %v142 = vld [vmem:[#allocation8 + $0x178] sm:$0xff]
    %v143 = vld [vmem:[#allocation8 + $0x180] sm:$0xff]
    %v144 = vld [vmem:[#allocation8 + $0x188] sm:$0xff]
    %v145 = vld [vmem:[#allocation8 + $0x190] sm:$0xff]
    %v146 = vld [vmem:[#allocation8 + $0x198] sm:$0xff]
    %v147 = vld [vmem:[#allocation8 + $0x1a0] sm:$0xff]
    %v148 = vld [vmem:[#allocation8 + $0x1a8] sm:$0xff]
    %v149 = vld [vmem:[#allocation8 + $0x1b0] sm:$0xff]
    %v150 = vld [vmem:[#allocation8 + $0x1b8] sm:$0xff]
    %v151 = vld [vmem:[#allocation8 + $0x1c0] sm:$0xff]
    %v152 = vld [vmem:[#allocation8 + $0x1c8] sm:$0xff]
    %v153 = vld [vmem:[#allocation8 + $0x1d0] sm:$0xff]
    %v154 = vld [vmem:[#allocation8 + $0x1d8] sm:$0xff]
    %v155 = vld [vmem:[#allocation8 + $0x1e0] sm:$0xff]
    %v156 = vld [vmem:[#allocation8 + $0x1e8] sm:$0xff]
    %v157 = vld [vmem:[#allocation8 + $0x1f0] sm:$0xff]
    %v158 = vld [vmem:[#allocation8 + $0x1f8] sm:$0xff]
    %v159 = vld [vmem:[#allocation9] sm:$0xf]
    %v160 = vld [vmem:[#allocation3] sm:$0xff]
    %v162 = vperm.slane %v159, 0
    %v163 = vperm.slane %v159, 2
    %v164 = vperm.slane %v159, 3
    %vm168 = vcmask 236544
    %v170 = vsel %vm168, %v160, 0
    %vm172 = vcmask 1044480
    %v174 = vsel %vm172, %v91, 0
    %v177 = vsel %vm172, %v93, 0
    %v180 = vsel %vm172, %v94, 0
    %182 = vmatpush.msra.mxu0 0.0
    %183 = vmatpush.msra.mxu0 0.0
    %184 = vmatpush.msra.mxu0 0.0
    %185 = vmatpush.msra.mxu0 0.0
    %186 = vmatpush.msra.mxu0 0.0
    %187 = vmatpush.msra.mxu0 0.0
    %188 = vmatpush.msra.mxu0 0.0
    %189 = vmatpush.msra.mxu0 0.0
    %190 = vmatpush.msra.mxu0 0.0
    %191 = vmatpush.msra.mxu0 0.0
    %192 = vmatpush.msra.mxu0 0.0
    %193 = vmatpush.msra.mxu0 0.0
    %194 = vmatpush.msra.mxu0 %v174
    %195 = vmatpush.msra.mxu0 %v87
    %196 = vmatpush.msra.mxu0 %v83
    %197 = vmatpush.msra.mxu0 %v79
    %198 = vmatmul.f32.gmra.mxu0 %v170
    %v199 = vpop.f32.mrf.mxu0
    %v200 = vadd.f32 %v162, %v199
    %201 = vdwg.mxu0
    %202 = vmatpush.msra.mxu0 0.0
    %203 = vmatpush.msra.mxu0 0.0
    %204 = vmatpush.msra.mxu0 0.0
    %205 = vmatpush.msra.mxu0 0.0
    %206 = vmatpush.msra.mxu0 0.0
    %207 = vmatpush.msra.mxu0 0.0
    %208 = vmatpush.msra.mxu0 0.0
    %209 = vmatpush.msra.mxu0 0.0
    %210 = vmatpush.msra.mxu0 0.0
    %211 = vmatpush.msra.mxu0 0.0
    %212 = vmatpush.msra.mxu0 0.0
    %213 = vmatpush.msra.mxu0 0.0
    %214 = vmatpush.msra.mxu0 %v177
    %215 = vmatpush.msra.mxu0 %v89
    %216 = vmatpush.msra.mxu0 %v85
    %217 = vmatpush.msra.mxu0 %v81
    %218 = vmatmul.f32.gmra.mxu0 %v170
    %v219 = vpop.f32.mrf.mxu0
    %v220 = vadd.f32 %v163, %v219
    %221 = vdwg.mxu0
    %222 = vmatpush.msra.mxu0 0.0
    %223 = vmatpush.msra.mxu0 0.0
    %224 = vmatpush.msra.mxu0 0.0
    %225 = vmatpush.msra.mxu0 0.0
    %226 = vmatpush.msra.mxu0 0.0
    %227 = vmatpush.msra.mxu0 0.0
    %228 = vmatpush.msra.mxu0 0.0
    %229 = vmatpush.msra.mxu0 0.0
    %230 = vmatpush.msra.mxu0 0.0
    %231 = vmatpush.msra.mxu0 0.0
    %232 = vmatpush.msra.mxu0 0.0
    %233 = vmatpush.msra.mxu0 0.0
    %234 = vmatpush.msra.mxu0 %v180
    %235 = vmatpush.msra.mxu0 %v90
    %236 = vmatpush.msra.mxu0 %v86
    %237 = vmatpush.msra.mxu0 %v82
    %238 = vmatmul.f32.gmra.mxu0 %v170
    %v239 = vpop.f32.mrf.mxu0
    %v240 = vadd.f32 %v164, %v239
    %241 = vdwg.mxu0
    %s242 = scalar_lea.vmem [#allocation3], 8
    %v243 = vld [vmem:[%s242] sm:$0xff]
    %v244 = vld [vmem:[%s242 + $0x8] sm:$0xff]
    %v245 = vld [vmem:[%s242 + $0x10] sm:$0xff]
    %v246 = vld [vmem:[%s242 + $0x18] sm:$0xff]
    %v247 = vld [vmem:[%s242 + $0x20] sm:$0xff]
    %v248 = vld [vmem:[%s242 + $0x28] sm:$0xff]
    %v249 = vld [vmem:[%s242 + $0x30] sm:$0xff]
    %v250 = vperm.slane %v159, 1
    %v253 = vsel %vm168, %v243, 0
    %v256 = vsel %vm168, %v244, 0
    %v259 = vsel %vm168, %v245, 0
    %v262 = vsel %vm168, %v246, 0
    %v265 = vsel %vm168, %v247, 0
    %v268 = vsel %vm168, %v248, 0
    %v271 = vsel %vm168, %v249, 0
    %v274 = vsel %vm172, %v92, 0
    %276 = vmatpush.msra.mxu0 0.0
    %277 = vmatpush.msra.mxu0 0.0
    %278 = vmatpush.msra.mxu0 0.0
    %279 = vmatpush.msra.mxu0 0.0
    %280 = vmatpush.msra.mxu0 0.0
    %281 = vmatpush.msra.mxu0 0.0
    %282 = vmatpush.msra.mxu0 0.0
    %283 = vmatpush.msra.mxu0 0.0
    %284 = vmatpush.msra.mxu0 0.0
    %285 = vmatpush.msra.mxu0 0.0
    %286 = vmatpush.msra.mxu0 0.0
    %287 = vmatpush.msra.mxu0 0.0
    %288 = vmatpush.msra.mxu0 %v174
    %289 = vmatpush.msra.mxu0 %v87
    %290 = vmatpush.msra.mxu0 %v83
    %291 = vmatpush.msra.mxu0 %v79
    %292 = vmatmul.f32.gmra.mxu0 %v253
    %v293 = vpop.f32.mrf.mxu0
    %v294 = vadd.f32 %v162, %v293
    %295 = vmatmul.f32.gmra.mxu0 %v256
    %v296 = vpop.f32.mrf.mxu0
    %v297 = vadd.f32 %v162, %v296
    %298 = vmatmul.f32.gmra.mxu0 %v259
    %v299 = vpop.f32.mrf.mxu0
    %v300 = vadd.f32 %v162, %v299
    %301 = vmatmul.f32.gmra.mxu0 %v262
    %v302 = vpop.f32.mrf.mxu0
    %v303 = vadd.f32 %v162, %v302
    %304 = vmatmul.f32.gmra.mxu0 %v265
    %v305 = vpop.f32.mrf.mxu0
    %v306 = vadd.f32 %v162, %v305
    %307 = vmatmul.f32.gmra.mxu0 %v268
    %v308 = vpop.f32.mrf.mxu0
    %v309 = vadd.f32 %v162, %v308
    %310 = vmatmul.f32.gmra.mxu0 %v271
    %v311 = vpop.f32.mrf.mxu0
    %v312 = vadd.f32 %v162, %v311
    %313 = vdwg.mxu0
    %314 = vmatpush.msra.mxu0 0.0
    %315 = vmatpush.msra.mxu0 0.0
    %316 = vmatpush.msra.mxu0 0.0
    %317 = vmatpush.msra.mxu0 0.0
    %318 = vmatpush.msra.mxu0 0.0
    %319 = vmatpush.msra.mxu0 0.0
    %320 = vmatpush.msra.mxu0 0.0
    %321 = vmatpush.msra.mxu0 0.0
    %322 = vmatpush.msra.mxu0 0.0
    %323 = vmatpush.msra.mxu0 0.0
    %324 = vmatpush.msra.mxu0 0.0
    %325 = vmatpush.msra.mxu0 0.0
    %326 = vmatpush.msra.mxu0 %v274
    %327 = vmatpush.msra.mxu0 %v88
    %328 = vmatpush.msra.mxu0 %v84
    %329 = vmatpush.msra.mxu0 %v80
    %330 = vmatmul.f32.gmra.mxu0 %v253
    %v331 = vpop.f32.mrf.mxu0
    %v332 = vadd.f32 %v250, %v331
    %333 = vmatmul.f32.gmra.mxu0 %v256
    %v334 = vpop.f32.mrf.mxu0
    %v335 = vadd.f32 %v250, %v334
    %336 = vmatmul.f32.gmra.mxu0 %v259
    %v337 = vpop.f32.mrf.mxu0
    %v338 = vadd.f32 %v250, %v337
    %339 = vmatmul.f32.gmra.mxu0 %v262
    %v340 = vpop.f32.mrf.mxu0
    %v341 = vadd.f32 %v250, %v340
    %342 = vmatmul.f32.gmra.mxu0 %v265
    %v343 = vpop.f32.mrf.mxu0
    %v344 = vadd.f32 %v250, %v343
    %345 = vmatmul.f32.gmra.mxu0 %v268
    %v346 = vpop.f32.mrf.mxu0
    %v347 = vadd.f32 %v250, %v346
    %348 = vmatmul.f32.gmra.mxu0 %v271
    %v349 = vpop.f32.mrf.mxu0
    %v350 = vadd.f32 %v250, %v349
    %351 = vdwg.mxu0
    %352 = vmatpush.msra.mxu0 0.0
    %353 = vmatpush.msra.mxu0 0.0
    %354 = vmatpush.msra.mxu0 0.0
    %355 = vmatpush.msra.mxu0 0.0
    %356 = vmatpush.msra.mxu0 0.0
    %357 = vmatpush.msra.mxu0 0.0
    %358 = vmatpush.msra.mxu0 0.0
    %359 = vmatpush.msra.mxu0 0.0
    %360 = vmatpush.msra.mxu0 0.0
    %361 = vmatpush.msra.mxu0 0.0
    %362 = vmatpush.msra.mxu0 0.0
    %363 = vmatpush.msra.mxu0 0.0
    %364 = vmatpush.msra.mxu0 %v177
    %365 = vmatpush.msra.mxu0 %v89
    %366 = vmatpush.msra.mxu0 %v85
    %367 = vmatpush.msra.mxu0 %v81
    %368 = vmatmul.f32.gmra.mxu0 %v253
    %v369 = vpop.f32.mrf.mxu0
    %v370 = vadd.f32 %v163, %v369
    %371 = vmatmul.f32.gmra.mxu0 %v256
    %v372 = vpop.f32.mrf.mxu0
    %v373 = vadd.f32 %v163, %v372
    %374 = vmatmul.f32.gmra.mxu0 %v259
    %v375 = vpop.f32.mrf.mxu0
    %v376 = vadd.f32 %v163, %v375
    %377 = vmatmul.f32.gmra.mxu0 %v262
    %v378 = vpop.f32.mrf.mxu0
    %v379 = vadd.f32 %v163, %v378
    %380 = vmatmul.f32.gmra.mxu0 %v265
    %v381 = vpop.f32.mrf.mxu0
    %v382 = vadd.f32 %v163, %v381
    %383 = vmatmul.f32.gmra.mxu0 %v268
    %v384 = vpop.f32.mrf.mxu0
    %v385 = vadd.f32 %v163, %v384
    %386 = vmatmul.f32.gmra.mxu0 %v271
    %v387 = vpop.f32.mrf.mxu0
    %v388 = vadd.f32 %v163, %v387
    %389 = vdwg.mxu0
    %390 = vmatpush.msra.mxu0 0.0
    %391 = vmatpush.msra.mxu0 0.0
    %392 = vmatpush.msra.mxu0 0.0
    %393 = vmatpush.msra.mxu0 0.0
    %394 = vmatpush.msra.mxu0 0.0
    %395 = vmatpush.msra.mxu0 0.0
    %396 = vmatpush.msra.mxu0 0.0
    %397 = vmatpush.msra.mxu0 0.0
    %398 = vmatpush.msra.mxu0 0.0
    %399 = vmatpush.msra.mxu0 0.0
    %400 = vmatpush.msra.mxu0 0.0
    %401 = vmatpush.msra.mxu0 0.0
    %402 = vmatpush.msra.mxu0 %v180
    %403 = vmatpush.msra.mxu0 %v90
    %404 = vmatpush.msra.mxu0 %v86
    %405 = vmatpush.msra.mxu0 %v82
    %406 = vmatmul.f32.gmra.mxu0 %v253
    %v407 = vpop.f32.mrf.mxu0
    %v408 = vadd.f32 %v164, %v407
    %409 = vmatmul.f32.gmra.mxu0 %v256
    %v410 = vpop.f32.mrf.mxu0
    %v411 = vadd.f32 %v164, %v410
    %412 = vmatmul.f32.gmra.mxu0 %v259
    %v413 = vpop.f32.mrf.mxu0
    %v414 = vadd.f32 %v164, %v413
    %415 = vmatmul.f32.gmra.mxu0 %v262
    %v416 = vpop.f32.mrf.mxu0
    %v417 = vadd.f32 %v164, %v416
    %418 = vmatmul.f32.gmra.mxu0 %v265
    %v419 = vpop.f32.mrf.mxu0
    %v420 = vadd.f32 %v164, %v419
    %421 = vmatmul.f32.gmra.mxu0 %v268
    %v422 = vpop.f32.mrf.mxu0
    %v423 = vadd.f32 %v164, %v422
    %424 = vmatmul.f32.gmra.mxu0 %v271
    %v425 = vpop.f32.mrf.mxu0
    %v426 = vadd.f32 %v164, %v425
    %427 = vdwg.mxu0
    %428 = vst [vmem:[#allocation2] sm:$0xff] %v294
    %429 = vst [vmem:[#allocation2 + $0x8] sm:$0xff] %v332
    %430 = vst [vmem:[#allocation2 + $0x10] sm:$0xff] %v370
    %431 = vst [vmem:[#allocation2 + $0x18] sm:$0xff] %v408
    %432 = vst [vmem:[#allocation2 + $0x20] sm:$0xff] %v297
    %433 = vst [vmem:[#allocation2 + $0x28] sm:$0xff] %v335
    %434 = vst [vmem:[#allocation2 + $0x30] sm:$0xff] %v373
    %435 = vst [vmem:[#allocation2 + $0x38] sm:$0xff] %v411
    %436 = vst [vmem:[#allocation2 + $0x40] sm:$0xff] %v300
    %437 = vst [vmem:[#allocation2 + $0x48] sm:$0xff] %v338
    %438 = vst [vmem:[#allocation2 + $0x50] sm:$0xff] %v376
    %439 = vst [vmem:[#allocation2 + $0x58] sm:$0xff] %v414
    %440 = vst [vmem:[#allocation2 + $0x60] sm:$0xff] %v303
    %441 = vst [vmem:[#allocation2 + $0x68] sm:$0xff] %v341
    %442 = vst [vmem:[#allocation2 + $0x70] sm:$0xff] %v379
    %443 = vst [vmem:[#allocation2 + $0x78] sm:$0xff] %v417
    %444 = vst [vmem:[#allocation2 + $0x80] sm:$0xff] %v306
    %445 = vst [vmem:[#allocation2 + $0x88] sm:$0xff] %v344
    %446 = vst [vmem:[#allocation2 + $0x90] sm:$0xff] %v382
    %447 = vst [vmem:[#allocation2 + $0x98] sm:$0xff] %v420
    %448 = vst [vmem:[#allocation2 + $0xa0] sm:$0xff] %v309
    %449 = vst [vmem:[#allocation2 + $0xa8] sm:$0xff] %v347
    %450 = vst [vmem:[#allocation2 + $0xb0] sm:$0xff] %v385
    %451 = vst [vmem:[#allocation2 + $0xb8] sm:$0xff] %v423
    %452 = vst [vmem:[#allocation2 + $0xc0] sm:$0xff] %v312
    %453 = vst [vmem:[#allocation2 + $0xc8] sm:$0xff] %v350
    %454 = vst [vmem:[#allocation2 + $0xd0] sm:$0xff] %v388
    %455 = vst [vmem:[#allocation2 + $0xd8] sm:$0xff] %v426
    %v456 = vmul.f32 %v200, 0.5
    %v457 = vtanh.pop %v456
    %v458 = vmul.f32 %v457, 0.5
    %v459 = vadd.f32 %v458, 0.5
    %v460 = vtanh.pop %v220
    %v461 = vmul.f32 %v240, 0.5
    %v462 = vtanh.pop %v461
    %v463 = vmul.f32 %v462, 0.5
    %v464 = vadd.f32 %v463, 0.5
    %v465 = vmul.f32 %v459, %v460
    %v466 = vtanh.pop %v465
    %v467 = vmul.f32 %v464, %v466
    %v468 = vld [vmem:[#allocation2] sm:$0xff]
    %v469 = vld [vmem:[#allocation2 + $0x8] sm:$0xff]
    %v470 = vld [vmem:[#allocation2 + $0x10] sm:$0xff]
    %v471 = vld [vmem:[#allocation2 + $0x18] sm:$0xff]
    %472 = vmatpush.msra.mxu0 %v155
    %473 = vmatpush.msra.mxu0 %v151
    %474 = vmatpush.msra.mxu0 %v147
    %475 = vmatpush.msra.mxu0 %v143
    %476 = vmatpush.msra.mxu0 %v139
    %477 = vmatpush.msra.mxu0 %v135
    %478 = vmatpush.msra.mxu0 %v131
    %479 = vmatpush.msra.mxu0 %v127
    %480 = vmatpush.msra.mxu0 %v123
    %481 = vmatpush.msra.mxu0 %v119
    %482 = vmatpush.msra.mxu0 %v115
    %483 = vmatpush.msra.mxu0 %v111
    %484 = vmatpush.msra.mxu0 %v107
    %485 = vmatpush.msra.mxu0 %v103
    %486 = vmatpush.msra.mxu0 %v99
    %487 = vmatpush.msra.mxu0 %v95
    %488 = vmatmul.f32.gmra.mxu0 %v467
    %v489 = vpop.f32.mrf.mxu0
    %v490 = vadd.f32 %v468, %v489
    %491 = vdwg.mxu0
    %492 = vmatpush.msra.mxu0 %v156
    %493 = vmatpush.msra.mxu0 %v152
    %494 = vmatpush.msra.mxu0 %v148
    %495 = vmatpush.msra.mxu0 %v144
    %496 = vmatpush.msra.mxu0 %v140
    %497 = vmatpush.msra.mxu0 %v136
    %498 = vmatpush.msra.mxu0 %v132
    %499 = vmatpush.msra.mxu0 %v128
    %500 = vmatpush.msra.mxu0 %v124
    %501 = vmatpush.msra.mxu0 %v120
    %502 = vmatpush.msra.mxu0 %v116
    %503 = vmatpush.msra.mxu0 %v112
    %504 = vmatpush.msra.mxu0 %v108
    %505 = vmatpush.msra.mxu0 %v104
    %506 = vmatpush.msra.mxu0 %v100
    %507 = vmatpush.msra.mxu0 %v96
    %508 = vmatmul.f32.gmra.mxu0 %v467
    %v509 = vpop.f32.mrf.mxu0
    %v510 = vadd.f32 %v469, %v509
    %511 = vdwg.mxu0
    %512 = vmatpush.msra.mxu0 %v157
    %513 = vmatpush.msra.mxu0 %v153
    %514 = vmatpush.msra.mxu0 %v149
    %515 = vmatpush.msra.mxu0 %v145
    %516 = vmatpush.msra.mxu0 %v141
    %517 = vmatpush.msra.mxu0 %v137
    %518 = vmatpush.msra.mxu0 %v133
    %519 = vmatpush.msra.mxu0 %v129
    %520 = vmatpush.msra.mxu0 %v125
    %521 = vmatpush.msra.mxu0 %v121
    %522 = vmatpush.msra.mxu0 %v117
    %523 = vmatpush.msra.mxu0 %v113
    %524 = vmatpush.msra.mxu0 %v109
    %525 = vmatpush.msra.mxu0 %v105
    %526 = vmatpush.msra.mxu0 %v101
    %527 = vmatpush.msra.mxu0 %v97
    %528 = vmatmul.f32.gmra.mxu0 %v467
    %v529 = vpop.f32.mrf.mxu0
    %v530 = vadd.f32 %v470, %v529
    %531 = vdwg.mxu0
    %532 = vmatpush.msra.mxu0 %v158
    %533 = vmatpush.msra.mxu0 %v154
    %534 = vmatpush.msra.mxu0 %v150
    %535 = vmatpush.msra.mxu0 %v146
    %536 = vmatpush.msra.mxu0 %v142
    %537 = vmatpush.msra.mxu0 %v138
    %538 = vmatpush.msra.mxu0 %v134
    %539 = vmatpush.msra.mxu0 %v130
    %540 = vmatpush.msra.mxu0 %v126
    %541 = vmatpush.msra.mxu0 %v122
    %542 = vmatpush.msra.mxu0 %v118
    %543 = vmatpush.msra.mxu0 %v114
    %544 = vmatpush.msra.mxu0 %v110
    %545 = vmatpush.msra.mxu0 %v106
    %546 = vmatpush.msra.mxu0 %v102
    %547 = vmatpush.msra.mxu0 %v98
    %548 = vmatmul.f32.gmra.mxu0 %v467
    %v549 = vpop.f32.mrf.mxu0
    %v550 = vadd.f32 %v471, %v549
    %551 = vdwg.mxu0
    %v552 = vmul.f32 %v490, 0.5
    %v553 = vtanh.pop %v552
    %v554 = vmul.f32 %v553, 0.5
    %v555 = vadd.f32 %v554, 0.5
    %v556 = vtanh.pop %v530
    %v557 = vmul.f32 %v550, 0.5
    %v558 = vtanh.pop %v557
    %v559 = vmul.f32 %v558, 0.5
    %v560 = vadd.f32 %v559, 0.5
    %v561 = vmul.f32 %v510, 0.5
    %v562 = vtanh.pop %v561
    %v563 = vmul.f32 %v562, 0.5
    %v564 = vadd.f32 %v563, 0.5
    %v565 = vmul.f32 %v564, %v465
    %v566 = vmul.f32 %v555, %v556
    %v567 = vadd.f32 %v565, %v566
    %v568 = vtanh.pop %v567
    %v569 = vmul.f32 %v560, %v568
    %v570 = vadd.f32 %v467, %v569
    %v571 = vld [vmem:[#allocation2 + $0x20] sm:$0xff]
    %v572 = vld [vmem:[#allocation2 + $0x28] sm:$0xff]
    %v573 = vld [vmem:[#allocation2 + $0x30] sm:$0xff]
    %v574 = vld [vmem:[#allocation2 + $0x38] sm:$0xff]
    %575 = vmatpush.msra.mxu0 %v155
    %576 = vmatpush.msra.mxu0 %v151
    %577 = vmatpush.msra.mxu0 %v147
    %578 = vmatpush.msra.mxu0 %v143
    %579 = vmatpush.msra.mxu0 %v139
    %580 = vmatpush.msra.mxu0 %v135
    %581 = vmatpush.msra.mxu0 %v131
    %582 = vmatpush.msra.mxu0 %v127
    %583 = vmatpush.msra.mxu0 %v123
    %584 = vmatpush.msra.mxu0 %v119
    %585 = vmatpush.msra.mxu0 %v115
    %586 = vmatpush.msra.mxu0 %v111
    %587 = vmatpush.msra.mxu0 %v107
    %588 = vmatpush.msra.mxu0 %v103
    %589 = vmatpush.msra.mxu0 %v99
    %590 = vmatpush.msra.mxu0 %v95
    %591 = vmatmul.f32.gmra.mxu0 %v569
    %v592 = vpop.f32.mrf.mxu0
    %v593 = vadd.f32 %v571, %v592
    %594 = vdwg.mxu0
    %595 = vmatpush.msra.mxu0 %v156
    %596 = vmatpush.msra.mxu0 %v152
    %597 = vmatpush.msra.mxu0 %v148
    %598 = vmatpush.msra.mxu0 %v144
    %599 = vmatpush.msra.mxu0 %v140
    %600 = vmatpush.msra.mxu0 %v136
    %601 = vmatpush.msra.mxu0 %v132
    %602 = vmatpush.msra.mxu0 %v128
    %603 = vmatpush.msra.mxu0 %v124
    %604 = vmatpush.msra.mxu0 %v120
    %605 = vmatpush.msra.mxu0 %v116
    %606 = vmatpush.msra.mxu0 %v112
    %607 = vmatpush.msra.mxu0 %v108
    %608 = vmatpush.msra.mxu0 %v104
    %609 = vmatpush.msra.mxu0 %v100
    %610 = vmatpush.msra.mxu0 %v96
    %611 = vmatmul.f32.gmra.mxu0 %v569
    %v612 = vpop.f32.mrf.mxu0
    %v613 = vadd.f32 %v572, %v612
    %614 = vdwg.mxu0
    %615 = vmatpush.msra.mxu0 %v157
    %616 = vmatpush.msra.mxu0 %v153
    %617 = vmatpush.msra.mxu0 %v149
    %618 = vmatpush.msra.mxu0 %v145
    %619 = vmatpush.msra.mxu0 %v141
    %620 = vmatpush.msra.mxu0 %v137
    %621 = vmatpush.msra.mxu0 %v133
    %622 = vmatpush.msra.mxu0 %v129
    %623 = vmatpush.msra.mxu0 %v125
    %624 = vmatpush.msra.mxu0 %v121
    %625 = vmatpush.msra.mxu0 %v117
    %626 = vmatpush.msra.mxu0 %v113
    %627 = vmatpush.msra.mxu0 %v109
    %628 = vmatpush.msra.mxu0 %v105
    %629 = vmatpush.msra.mxu0 %v101
    %630 = vmatpush.msra.mxu0 %v97
    %631 = vmatmul.f32.gmra.mxu0 %v569
    %v632 = vpop.f32.mrf.mxu0
    %v633 = vadd.f32 %v573, %v632
    %634 = vdwg.mxu0
    %635 = vmatpush.msra.mxu0 %v158
    %636 = vmatpush.msra.mxu0 %v154
    %637 = vmatpush.msra.mxu0 %v150
    %638 = vmatpush.msra.mxu0 %v146
    %639 = vmatpush.msra.mxu0 %v142
    %640 = vmatpush.msra.mxu0 %v138
    %641 = vmatpush.msra.mxu0 %v134
    %642 = vmatpush.msra.mxu0 %v130
    %643 = vmatpush.msra.mxu0 %v126
    %644 = vmatpush.msra.mxu0 %v122
    %645 = vmatpush.msra.mxu0 %v118
    %646 = vmatpush.msra.mxu0 %v114
    %647 = vmatpush.msra.mxu0 %v110
    %648 = vmatpush.msra.mxu0 %v106
    %649 = vmatpush.msra.mxu0 %v102
    %650 = vmatpush.msra.mxu0 %v98
    %651 = vmatmul.f32.gmra.mxu0 %v569
    %v652 = vpop.f32.mrf.mxu0
    %v653 = vadd.f32 %v574, %v652
    %654 = vdwg.mxu0
    %v655 = vmul.f32 %v593, 0.5
    %v656 = vtanh.pop %v655
    %v657 = vmul.f32 %v656, 0.5
    %v658 = vadd.f32 %v657, 0.5
    %v659 = vtanh.pop %v633
    %v660 = vmul.f32 %v653, 0.5
    %v661 = vtanh.pop %v660
    %v662 = vmul.f32 %v661, 0.5
    %v663 = vadd.f32 %v662, 0.5
    %v664 = vmul.f32 %v613, 0.5
    %v665 = vtanh.pop %v664
    %v666 = vmul.f32 %v665, 0.5
    %v667 = vadd.f32 %v666, 0.5
    %v668 = vmul.f32 %v667, %v567
    %v669 = vmul.f32 %v658, %v659
    %v670 = vadd.f32 %v668, %v669
    %v671 = vtanh.pop %v670
    %v672 = vmul.f32 %v663, %v671
    %v673 = vadd.f32 %v570, %v672
    %v674 = vld [vmem:[#allocation2 + $0x40] sm:$0xff]
    %v675 = vld [vmem:[#allocation2 + $0x48] sm:$0xff]
    %v676 = vld [vmem:[#allocation2 + $0x50] sm:$0xff]
    %v677 = vld [vmem:[#allocation2 + $0x58] sm:$0xff]
    %678 = vmatpush.msra.mxu0 %v155
    %679 = vmatpush.msra.mxu0 %v151
    %680 = vmatpush.msra.mxu0 %v147
    %681 = vmatpush.msra.mxu0 %v143
    %682 = vmatpush.msra.mxu0 %v139
    %683 = vmatpush.msra.mxu0 %v135
    %684 = vmatpush.msra.mxu0 %v131
    %685 = vmatpush.msra.mxu0 %v127
    %686 = vmatpush.msra.mxu0 %v123
    %687 = vmatpush.msra.mxu0 %v119
    %688 = vmatpush.msra.mxu0 %v115
    %689 = vmatpush.msra.mxu0 %v111
    %690 = vmatpush.msra.mxu0 %v107
    %691 = vmatpush.msra.mxu0 %v103
    %692 = vmatpush.msra.mxu0 %v99
    %693 = vmatpush.msra.mxu0 %v95
    %694 = vmatmul.f32.gmra.mxu0 %v672
    %v695 = vpop.f32.mrf.mxu0
    %v696 = vadd.f32 %v674, %v695
    %697 = vdwg.mxu0
    %698 = vmatpush.msra.mxu0 %v156
    %699 = vmatpush.msra.mxu0 %v152
    %700 = vmatpush.msra.mxu0 %v148
    %701 = vmatpush.msra.mxu0 %v144
    %702 = vmatpush.msra.mxu0 %v140
    %703 = vmatpush.msra.mxu0 %v136
    %704 = vmatpush.msra.mxu0 %v132
    %705 = vmatpush.msra.mxu0 %v128
    %706 = vmatpush.msra.mxu0 %v124
    %707 = vmatpush.msra.mxu0 %v120
    %708 = vmatpush.msra.mxu0 %v116
    %709 = vmatpush.msra.mxu0 %v112
    %710 = vmatpush.msra.mxu0 %v108
    %711 = vmatpush.msra.mxu0 %v104
    %712 = vmatpush.msra.mxu0 %v100
    %713 = vmatpush.msra.mxu0 %v96
    %714 = vmatmul.f32.gmra.mxu0 %v672
    %v715 = vpop.f32.mrf.mxu0
    %v716 = vadd.f32 %v675, %v715
    %717 = vdwg.mxu0
    %718 = vmatpush.msra.mxu0 %v157
    %719 = vmatpush.msra.mxu0 %v153
    %720 = vmatpush.msra.mxu0 %v149
    %721 = vmatpush.msra.mxu0 %v145
    %722 = vmatpush.msra.mxu0 %v141
    %723 = vmatpush.msra.mxu0 %v137
    %724 = vmatpush.msra.mxu0 %v133
    %725 = vmatpush.msra.mxu0 %v129
    %726 = vmatpush.msra.mxu0 %v125
    %727 = vmatpush.msra.mxu0 %v121
    %728 = vmatpush.msra.mxu0 %v117
    %729 = vmatpush.msra.mxu0 %v113
    %730 = vmatpush.msra.mxu0 %v109
    %731 = vmatpush.msra.mxu0 %v105
    %732 = vmatpush.msra.mxu0 %v101
    %733 = vmatpush.msra.mxu0 %v97
    %734 = vmatmul.f32.gmra.mxu0 %v672
    %v735 = vpop.f32.mrf.mxu0
    %v736 = vadd.f32 %v676, %v735
    %737 = vdwg.mxu0
    %738 = vmatpush.msra.mxu0 %v158
    %739 = vmatpush.msra.mxu0 %v154
    %740 = vmatpush.msra.mxu0 %v150
    %741 = vmatpush.msra.mxu0 %v146
    %742 = vmatpush.msra.mxu0 %v142
    %743 = vmatpush.msra.mxu0 %v138
    %744 = vmatpush.msra.mxu0 %v134
    %745 = vmatpush.msra.mxu0 %v130
    %746 = vmatpush.msra.mxu0 %v126
    %747 = vmatpush.msra.mxu0 %v122
    %748 = vmatpush.msra.mxu0 %v118
    %749 = vmatpush.msra.mxu0 %v114
    %750 = vmatpush.msra.mxu0 %v110
    %751 = vmatpush.msra.mxu0 %v106
    %752 = vmatpush.msra.mxu0 %v102
    %753 = vmatpush.msra.mxu0 %v98
    %754 = vmatmul.f32.gmra.mxu0 %v672
    %v755 = vpop.f32.mrf.mxu0
    %v756 = vadd.f32 %v677, %v755
    %757 = vdwg.mxu0
    %v758 = vmul.f32 %v696, 0.5
    %v759 = vtanh.pop %v758
    %v760 = vmul.f32 %v759, 0.5
    %v761 = vadd.f32 %v760, 0.5
    %v762 = vtanh.pop %v736
    %v763 = vmul.f32 %v756, 0.5
    %v764 = vtanh.pop %v763
    %v765 = vmul.f32 %v764, 0.5
    %v766 = vadd.f32 %v765, 0.5
    %v767 = vmul.f32 %v716, 0.5
    %v768 = vtanh.pop %v767
    %v769 = vmul.f32 %v768, 0.5
    %v770 = vadd.f32 %v769, 0.5
    %v771 = vmul.f32 %v770, %v670
    %v772 = vmul.f32 %v761, %v762
    %v773 = vadd.f32 %v771, %v772
    %v774 = vtanh.pop %v773
    %v775 = vmul.f32 %v766, %v774
    %v776 = vadd.f32 %v673, %v775
    %v777 = vld [vmem:[#allocation2 + $0x60] sm:$0xff]
    %v778 = vld [vmem:[#allocation2 + $0x68] sm:$0xff]
    %v779 = vld [vmem:[#allocation2 + $0x70] sm:$0xff]
    %v780 = vld [vmem:[#allocation2 + $0x78] sm:$0xff]
    %781 = vmatpush.msra.mxu0 %v155
    %782 = vmatpush.msra.mxu0 %v151
    %783 = vmatpush.msra.mxu0 %v147
    %784 = vmatpush.msra.mxu0 %v143
    %785 = vmatpush.msra.mxu0 %v139
    %786 = vmatpush.msra.mxu0 %v135
    %787 = vmatpush.msra.mxu0 %v131
    %788 = vmatpush.msra.mxu0 %v127
    %789 = vmatpush.msra.mxu0 %v123
    %790 = vmatpush.msra.mxu0 %v119
    %791 = vmatpush.msra.mxu0 %v115
    %792 = vmatpush.msra.mxu0 %v111
    %793 = vmatpush.msra.mxu0 %v107
    %794 = vmatpush.msra.mxu0 %v103
    %795 = vmatpush.msra.mxu0 %v99
    %796 = vmatpush.msra.mxu0 %v95
    %797 = vmatmul.f32.gmra.mxu0 %v775
    %v798 = vpop.f32.mrf.mxu0
    %v799 = vadd.f32 %v777, %v798
    %800 = vdwg.mxu0
    %801 = vmatpush.msra.mxu0 %v156
    %802 = vmatpush.msra.mxu0 %v152
    %803 = vmatpush.msra.mxu0 %v148
    %804 = vmatpush.msra.mxu0 %v144
    %805 = vmatpush.msra.mxu0 %v140
    %806 = vmatpush.msra.mxu0 %v136
    %807 = vmatpush.msra.mxu0 %v132
    %808 = vmatpush.msra.mxu0 %v128
    %809 = vmatpush.msra.mxu0 %v124
    %810 = vmatpush.msra.mxu0 %v120
    %811 = vmatpush.msra.mxu0 %v116
    %812 = vmatpush.msra.mxu0 %v112
    %813 = vmatpush.msra.mxu0 %v108
    %814 = vmatpush.msra.mxu0 %v104
    %815 = vmatpush.msra.mxu0 %v100
    %816 = vmatpush.msra.mxu0 %v96
    %817 = vmatmul.f32.gmra.mxu0 %v775
    %v818 = vpop.f32.mrf.mxu0
    %v819 = vadd.f32 %v778, %v818
    %820 = vdwg.mxu0
    %821 = vmatpush.msra.mxu0 %v157
    %822 = vmatpush.msra.mxu0 %v153
    %823 = vmatpush.msra.mxu0 %v149
    %824 = vmatpush.msra.mxu0 %v145
    %825 = vmatpush.msra.mxu0 %v141
    %826 = vmatpush.msra.mxu0 %v137
    %827 = vmatpush.msra.mxu0 %v133
    %828 = vmatpush.msra.mxu0 %v129
    %829 = vmatpush.msra.mxu0 %v125
    %830 = vmatpush.msra.mxu0 %v121
    %831 = vmatpush.msra.mxu0 %v117
    %832 = vmatpush.msra.mxu0 %v113
    %833 = vmatpush.msra.mxu0 %v109
    %834 = vmatpush.msra.mxu0 %v105
    %835 = vmatpush.msra.mxu0 %v101
    %836 = vmatpush.msra.mxu0 %v97
    %837 = vmatmul.f32.gmra.mxu0 %v775
    %v838 = vpop.f32.mrf.mxu0
    %v839 = vadd.f32 %v779, %v838
    %840 = vdwg.mxu0
    %841 = vmatpush.msra.mxu0 %v158
    %842 = vmatpush.msra.mxu0 %v154
    %843 = vmatpush.msra.mxu0 %v150
    %844 = vmatpush.msra.mxu0 %v146
    %845 = vmatpush.msra.mxu0 %v142
    %846 = vmatpush.msra.mxu0 %v138
    %847 = vmatpush.msra.mxu0 %v134
    %848 = vmatpush.msra.mxu0 %v130
    %849 = vmatpush.msra.mxu0 %v126
    %850 = vmatpush.msra.mxu0 %v122
    %851 = vmatpush.msra.mxu0 %v118
    %852 = vmatpush.msra.mxu0 %v114
    %853 = vmatpush.msra.mxu0 %v110
    %854 = vmatpush.msra.mxu0 %v106
    %855 = vmatpush.msra.mxu0 %v102
    %856 = vmatpush.msra.mxu0 %v98
    %857 = vmatmul.f32.gmra.mxu0 %v775
    %v858 = vpop.f32.mrf.mxu0
    %v859 = vadd.f32 %v780, %v858
    %860 = vdwg.mxu0
    %v861 = vmul.f32 %v799, 0.5
    %v862 = vtanh.pop %v861
    %v863 = vmul.f32 %v862, 0.5
    %v864 = vadd.f32 %v863, 0.5
    %v865 = vtanh.pop %v839
    %v866 = vmul.f32 %v859, 0.5
    %v867 = vtanh.pop %v866
    %v868 = vmul.f32 %v867, 0.5
    %v869 = vadd.f32 %v868, 0.5
    %v870 = vmul.f32 %v819, 0.5
    %v871 = vtanh.pop %v870
    %v872 = vmul.f32 %v871, 0.5
    %v873 = vadd.f32 %v872, 0.5
    %v874 = vmul.f32 %v873, %v773
    %v875 = vmul.f32 %v864, %v865
    %v876 = vadd.f32 %v874, %v875
    %v877 = vtanh.pop %v876
    %v878 = vmul.f32 %v869, %v877
    %v879 = vadd.f32 %v776, %v878
    %v880 = vld [vmem:[#allocation2 + $0x80] sm:$0xff]
    %v881 = vld [vmem:[#allocation2 + $0x88] sm:$0xff]
    %v882 = vld [vmem:[#allocation2 + $0x90] sm:$0xff]
    %v883 = vld [vmem:[#allocation2 + $0x98] sm:$0xff]
    %884 = vmatpush.msra.mxu0 %v155
    %885 = vmatpush.msra.mxu0 %v151
    %886 = vmatpush.msra.mxu0 %v147
    %887 = vmatpush.msra.mxu0 %v143
    %888 = vmatpush.msra.mxu0 %v139
    %889 = vmatpush.msra.mxu0 %v135
    %890 = vmatpush.msra.mxu0 %v131
    %891 = vmatpush.msra.mxu0 %v127
    %892 = vmatpush.msra.mxu0 %v123
    %893 = vmatpush.msra.mxu0 %v119
    %894 = vmatpush.msra.mxu0 %v115
    %895 = vmatpush.msra.mxu0 %v111
    %896 = vmatpush.msra.mxu0 %v107
    %897 = vmatpush.msra.mxu0 %v103
    %898 = vmatpush.msra.mxu0 %v99
    %899 = vmatpush.msra.mxu0 %v95
    %900 = vmatmul.f32.gmra.mxu0 %v878
    %v901 = vpop.f32.mrf.mxu0
    %v902 = vadd.f32 %v880, %v901
    %903 = vdwg.mxu0
    %904 = vmatpush.msra.mxu0 %v156
    %905 = vmatpush.msra.mxu0 %v152
    %906 = vmatpush.msra.mxu0 %v148
    %907 = vmatpush.msra.mxu0 %v144
    %908 = vmatpush.msra.mxu0 %v140
    %909 = vmatpush.msra.mxu0 %v136
    %910 = vmatpush.msra.mxu0 %v132
    %911 = vmatpush.msra.mxu0 %v128
    %912 = vmatpush.msra.mxu0 %v124
    %913 = vmatpush.msra.mxu0 %v120
    %914 = vmatpush.msra.mxu0 %v116
    %915 = vmatpush.msra.mxu0 %v112
    %916 = vmatpush.msra.mxu0 %v108
    %917 = vmatpush.msra.mxu0 %v104
    %918 = vmatpush.msra.mxu0 %v100
    %919 = vmatpush.msra.mxu0 %v96
    %920 = vmatmul.f32.gmra.mxu0 %v878
    %v921 = vpop.f32.mrf.mxu0
    %v922 = vadd.f32 %v881, %v921
    %923 = vdwg.mxu0
    %924 = vmatpush.msra.mxu0 %v157
    %925 = vmatpush.msra.mxu0 %v153
    %926 = vmatpush.msra.mxu0 %v149
    %927 = vmatpush.msra.mxu0 %v145
    %928 = vmatpush.msra.mxu0 %v141
    %929 = vmatpush.msra.mxu0 %v137
    %930 = vmatpush.msra.mxu0 %v133
    %931 = vmatpush.msra.mxu0 %v129
    %932 = vmatpush.msra.mxu0 %v125
    %933 = vmatpush.msra.mxu0 %v121
    %934 = vmatpush.msra.mxu0 %v117
    %935 = vmatpush.msra.mxu0 %v113
    %936 = vmatpush.msra.mxu0 %v109
    %937 = vmatpush.msra.mxu0 %v105
    %938 = vmatpush.msra.mxu0 %v101
    %939 = vmatpush.msra.mxu0 %v97
    %940 = vmatmul.f32.gmra.mxu0 %v878
    %v941 = vpop.f32.mrf.mxu0
    %v942 = vadd.f32 %v882, %v941
    %943 = vdwg.mxu0
    %944 = vmatpush.msra.mxu0 %v158
    %945 = vmatpush.msra.mxu0 %v154
    %946 = vmatpush.msra.mxu0 %v150
    %947 = vmatpush.msra.mxu0 %v146
    %948 = vmatpush.msra.mxu0 %v142
    %949 = vmatpush.msra.mxu0 %v138
    %950 = vmatpush.msra.mxu0 %v134
    %951 = vmatpush.msra.mxu0 %v130
    %952 = vmatpush.msra.mxu0 %v126
    %953 = vmatpush.msra.mxu0 %v122
    %954 = vmatpush.msra.mxu0 %v118
    %955 = vmatpush.msra.mxu0 %v114
    %956 = vmatpush.msra.mxu0 %v110
    %957 = vmatpush.msra.mxu0 %v106
    %958 = vmatpush.msra.mxu0 %v102
    %959 = vmatpush.msra.mxu0 %v98
    %960 = vmatmul.f32.gmra.mxu0 %v878
    %v961 = vpop.f32.mrf.mxu0
    %v962 = vadd.f32 %v883, %v961
    %963 = vdwg.mxu0
    %v964 = vmul.f32 %v902, 0.5
    %v965 = vtanh.pop %v964
    %v966 = vmul.f32 %v965, 0.5
    %v967 = vadd.f32 %v966, 0.5
    %v968 = vtanh.pop %v942
    %v969 = vmul.f32 %v962, 0.5
    %v970 = vtanh.pop %v969
    %v971 = vmul.f32 %v970, 0.5
    %v972 = vadd.f32 %v971, 0.5
    %v973 = vmul.f32 %v922, 0.5
    %v974 = vtanh.pop %v973
    %v975 = vmul.f32 %v974, 0.5
    %v976 = vadd.f32 %v975, 0.5
    %v977 = vmul.f32 %v976, %v876
    %v978 = vmul.f32 %v967, %v968
    %v979 = vadd.f32 %v977, %v978
    %v980 = vtanh.pop %v979
    %v981 = vmul.f32 %v972, %v980
    %v982 = vadd.f32 %v879, %v981
    %v983 = vld [vmem:[#allocation2 + $0xa0] sm:$0xff]
    %v984 = vld [vmem:[#allocation2 + $0xa8] sm:$0xff]
    %v985 = vld [vmem:[#allocation2 + $0xb0] sm:$0xff]
    %v986 = vld [vmem:[#allocation2 + $0xb8] sm:$0xff]
    %987 = vmatpush.msra.mxu0 %v155
    %988 = vmatpush.msra.mxu0 %v151
    %989 = vmatpush.msra.mxu0 %v147
    %990 = vmatpush.msra.mxu0 %v143
    %991 = vmatpush.msra.mxu0 %v139
    %992 = vmatpush.msra.mxu0 %v135
    %993 = vmatpush.msra.mxu0 %v131
    %994 = vmatpush.msra.mxu0 %v127
    %995 = vmatpush.msra.mxu0 %v123
    %996 = vmatpush.msra.mxu0 %v119
    %997 = vmatpush.msra.mxu0 %v115
    %998 = vmatpush.msra.mxu0 %v111
    %999 = vmatpush.msra.mxu0 %v107
    %1000 = vmatpush.msra.mxu0 %v103
    %1001 = vmatpush.msra.mxu0 %v99
    %1002 = vmatpush.msra.mxu0 %v95
    %1003 = vmatmul.f32.gmra.mxu0 %v981
    %v1004 = vpop.f32.mrf.mxu0
    %v1005 = vadd.f32 %v983, %v1004
    %1006 = vdwg.mxu0
    %1007 = vmatpush.msra.mxu0 %v156
    %1008 = vmatpush.msra.mxu0 %v152
    %1009 = vmatpush.msra.mxu0 %v148
    %1010 = vmatpush.msra.mxu0 %v144
    %1011 = vmatpush.msra.mxu0 %v140
    %1012 = vmatpush.msra.mxu0 %v136
    %1013 = vmatpush.msra.mxu0 %v132
    %1014 = vmatpush.msra.mxu0 %v128
    %1015 = vmatpush.msra.mxu0 %v124
    %1016 = vmatpush.msra.mxu0 %v120
    %1017 = vmatpush.msra.mxu0 %v116
    %1018 = vmatpush.msra.mxu0 %v112
    %1019 = vmatpush.msra.mxu0 %v108
    %1020 = vmatpush.msra.mxu0 %v104
    %1021 = vmatpush.msra.mxu0 %v100
    %1022 = vmatpush.msra.mxu0 %v96
    %1023 = vmatmul.f32.gmra.mxu0 %v981
    %v1024 = vpop.f32.mrf.mxu0
    %v1025 = vadd.f32 %v984, %v1024
    %1026 = vdwg.mxu0
    %1027 = vmatpush.msra.mxu0 %v157
    %1028 = vmatpush.msra.mxu0 %v153
    %1029 = vmatpush.msra.mxu0 %v149
    %1030 = vmatpush.msra.mxu0 %v145
    %1031 = vmatpush.msra.mxu0 %v141
    %1032 = vmatpush.msra.mxu0 %v137
    %1033 = vmatpush.msra.mxu0 %v133
    %1034 = vmatpush.msra.mxu0 %v129
    %1035 = vmatpush.msra.mxu0 %v125
    %1036 = vmatpush.msra.mxu0 %v121
    %1037 = vmatpush.msra.mxu0 %v117
    %1038 = vmatpush.msra.mxu0 %v113
    %1039 = vmatpush.msra.mxu0 %v109
    %1040 = vmatpush.msra.mxu0 %v105
    %1041 = vmatpush.msra.mxu0 %v101
    %1042 = vmatpush.msra.mxu0 %v97
    %1043 = vmatmul.f32.gmra.mxu0 %v981
    %v1044 = vpop.f32.mrf.mxu0
    %v1045 = vadd.f32 %v985, %v1044
    %1046 = vdwg.mxu0
    %1047 = vmatpush.msra.mxu0 %v158
    %1048 = vmatpush.msra.mxu0 %v154
    %1049 = vmatpush.msra.mxu0 %v150
    %1050 = vmatpush.msra.mxu0 %v146
    %1051 = vmatpush.msra.mxu0 %v142
    %1052 = vmatpush.msra.mxu0 %v138
    %1053 = vmatpush.msra.mxu0 %v134
    %1054 = vmatpush.msra.mxu0 %v130
    %1055 = vmatpush.msra.mxu0 %v126
    %1056 = vmatpush.msra.mxu0 %v122
    %1057 = vmatpush.msra.mxu0 %v118
    %1058 = vmatpush.msra.mxu0 %v114
    %1059 = vmatpush.msra.mxu0 %v110
    %1060 = vmatpush.msra.mxu0 %v106
    %1061 = vmatpush.msra.mxu0 %v102
    %1062 = vmatpush.msra.mxu0 %v98
    %1063 = vmatmul.f32.gmra.mxu0 %v981
    %v1064 = vpop.f32.mrf.mxu0
    %v1065 = vadd.f32 %v986, %v1064
    %1066 = vdwg.mxu0
    %v1067 = vmul.f32 %v1005, 0.5
    %v1068 = vtanh.pop %v1067
    %v1069 = vmul.f32 %v1068, 0.5
    %v1070 = vadd.f32 %v1069, 0.5
    %v1071 = vtanh.pop %v1045
    %v1072 = vmul.f32 %v1065, 0.5
    %v1073 = vtanh.pop %v1072
    %v1074 = vmul.f32 %v1073, 0.5
    %v1075 = vadd.f32 %v1074, 0.5
    %v1076 = vmul.f32 %v1025, 0.5
    %v1077 = vtanh.pop %v1076
    %v1078 = vmul.f32 %v1077, 0.5
    %v1079 = vadd.f32 %v1078, 0.5
    %v1080 = vmul.f32 %v1079, %v979
    %v1081 = vmul.f32 %v1070, %v1071
    %v1082 = vadd.f32 %v1080, %v1081
    %v1083 = vtanh.pop %v1082
    %v1084 = vmul.f32 %v1075, %v1083
    %v1085 = vadd.f32 %v982, %v1084
    %v1086 = vld [vmem:[#allocation2 + $0xc0] sm:$0xff]
    %v1087 = vld [vmem:[#allocation2 + $0xc8] sm:$0xff]
    %v1088 = vld [vmem:[#allocation2 + $0xd0] sm:$0xff]
    %v1089 = vld [vmem:[#allocation2 + $0xd8] sm:$0xff]
    %1090 = vmatpush.msra.mxu0 %v155
    %1091 = vmatpush.msra.mxu0 %v151
    %1092 = vmatpush.msra.mxu0 %v147
    %1093 = vmatpush.msra.mxu0 %v143
    %1094 = vmatpush.msra.mxu0 %v139
    %1095 = vmatpush.msra.mxu0 %v135
    %1096 = vmatpush.msra.mxu0 %v131
    %1097 = vmatpush.msra.mxu0 %v127
    %1098 = vmatpush.msra.mxu0 %v123
    %1099 = vmatpush.msra.mxu0 %v119
    %1100 = vmatpush.msra.mxu0 %v115
    %1101 = vmatpush.msra.mxu0 %v111
    %1102 = vmatpush.msra.mxu0 %v107
    %1103 = vmatpush.msra.mxu0 %v103
    %1104 = vmatpush.msra.mxu0 %v99
    %1105 = vmatpush.msra.mxu0 %v95
    %1106 = vmatmul.f32.gmra.mxu0 %v1084
    %v1107 = vpop.f32.mrf.mxu0
    %v1108 = vadd.f32 %v1086, %v1107
    %1109 = vdwg.mxu0
    %1110 = vmatpush.msra.mxu0 %v156
    %1111 = vmatpush.msra.mxu0 %v152
    %1112 = vmatpush.msra.mxu0 %v148
    %1113 = vmatpush.msra.mxu0 %v144
    %1114 = vmatpush.msra.mxu0 %v140
    %1115 = vmatpush.msra.mxu0 %v136
    %1116 = vmatpush.msra.mxu0 %v132
    %1117 = vmatpush.msra.mxu0 %v128
    %1118 = vmatpush.msra.mxu0 %v124
    %1119 = vmatpush.msra.mxu0 %v120
    %1120 = vmatpush.msra.mxu0 %v116
    %1121 = vmatpush.msra.mxu0 %v112
    %1122 = vmatpush.msra.mxu0 %v108
    %1123 = vmatpush.msra.mxu0 %v104
    %1124 = vmatpush.msra.mxu0 %v100
    %1125 = vmatpush.msra.mxu0 %v96
    %1126 = vmatmul.f32.gmra.mxu0 %v1084
    %v1127 = vpop.f32.mrf.mxu0
    %v1128 = vadd.f32 %v1087, %v1127
    %1129 = vdwg.mxu0
    %1130 = vmatpush.msra.mxu0 %v157
    %1131 = vmatpush.msra.mxu0 %v153
    %1132 = vmatpush.msra.mxu0 %v149
    %1133 = vmatpush.msra.mxu0 %v145
    %1134 = vmatpush.msra.mxu0 %v141
    %1135 = vmatpush.msra.mxu0 %v137
    %1136 = vmatpush.msra.mxu0 %v133
    %1137 = vmatpush.msra.mxu0 %v129
    %1138 = vmatpush.msra.mxu0 %v125
    %1139 = vmatpush.msra.mxu0 %v121
    %1140 = vmatpush.msra.mxu0 %v117
    %1141 = vmatpush.msra.mxu0 %v113
    %1142 = vmatpush.msra.mxu0 %v109
    %1143 = vmatpush.msra.mxu0 %v105
    %1144 = vmatpush.msra.mxu0 %v101
    %1145 = vmatpush.msra.mxu0 %v97
    %1146 = vmatmul.f32.gmra.mxu0 %v1084
    %v1147 = vpop.f32.mrf.mxu0
    %v1148 = vadd.f32 %v1088, %v1147
    %1149 = vdwg.mxu0
    %1150 = vmatpush.msra.mxu0 %v158
    %1151 = vmatpush.msra.mxu0 %v154
    %1152 = vmatpush.msra.mxu0 %v150
    %1153 = vmatpush.msra.mxu0 %v146
    %1154 = vmatpush.msra.mxu0 %v142
    %1155 = vmatpush.msra.mxu0 %v138
    %1156 = vmatpush.msra.mxu0 %v134
    %1157 = vmatpush.msra.mxu0 %v130
    %1158 = vmatpush.msra.mxu0 %v126
    %1159 = vmatpush.msra.mxu0 %v122
    %1160 = vmatpush.msra.mxu0 %v118
    %1161 = vmatpush.msra.mxu0 %v114
    %1162 = vmatpush.msra.mxu0 %v110
    %1163 = vmatpush.msra.mxu0 %v106
    %1164 = vmatpush.msra.mxu0 %v102
    %1165 = vmatpush.msra.mxu0 %v98
    %1166 = vmatmul.f32.gmra.mxu0 %v1084
    %v1167 = vpop.f32.mrf.mxu0
    %v1168 = vadd.f32 %v1089, %v1167
    %1169 = vdwg.mxu0
    %v1170 = vmul.f32 %v1108, 0.5
    %v1171 = vtanh.pop %v1170
    %v1172 = vmul.f32 %v1171, 0.5
    %v1173 = vadd.f32 %v1172, 0.5
    %v1174 = vtanh.pop %v1148
    %v1175 = vmul.f32 %v1168, 0.5
    %v1176 = vtanh.pop %v1175
    %v1177 = vmul.f32 %v1176, 0.5
    %v1178 = vadd.f32 %v1177, 0.5
    %v1179 = vmul.f32 %v1128, 0.5
    %v1180 = vtanh.pop %v1179
    %v1181 = vmul.f32 %v1180, 0.5
    %v1182 = vadd.f32 %v1181, 0.5
    %v1183 = vmul.f32 %v1182, %v1082
    %v1184 = vmul.f32 %v1173, %v1174
    %v1185 = vadd.f32 %v1183, %v1184
    %v1186 = vtanh.pop %v1185
    %v1187 = vmul.f32 %v1178, %v1186
    %v1188 = vadd.f32 %v1085, %v1187
    %1189 = vst [vmem:[#allocation11] sm:$0xff] %v1188
    // Predicated region
    $region34: #{tpu_custom_call.1} parent=1 // pred_check
      _
    $region35: #{tpu_custom_call.1} parent=1 // pred_check_branch
      %1191 = sbr.rel (0) target = $region37
    $region36: #{tpu_custom_call.1} parent=1 // pred_region
      %1193 = vsyncadd [#allocation5], 0
      %s1195 = sshll.u32 [#allocation11], 4
      %s1196 = int_to_ptr.vmem [resolvable:$true] %s1195
      %s1197 = sshll.u32 %s4, 4
      %s1198 = int_to_ptr.hbm [resolvable:$true] %s1197
      %1200 = dma.vmem_to_hbm [thread:$0]  %s1196, 128, %s1198, [#allocation5]
    $region37: #{tpu_custom_call.1} parent=1 // pred_fallthru
      _
    // Predicated region
    $region38: #{tpu_custom_call.1} parent=1 // pred_check
      _
    $region39: #{tpu_custom_call.1} parent=1 // pred_check_branch
      %1202 = sbr.rel (0) target = $region41
    $region40: #{tpu_custom_call.1} parent=1 // pred_region
      %1204 = dma.done [#allocation5], 128
    $region41: #{tpu_custom_call.1} parent=1 // pred_fallthru
      _
    %1205 = vsyncpa [#allocation4], 1
    %1206 = vsyncpa [#allocation7], 1
    %1207 = vsyncpa [#allocation10], 1
    %1208 = vsyncpa [#allocation5], 1

</llo_original>
